<compile_context>
chip_gen: v5e
topology: v5e:2x2
jax: 0.10.0
libtpu: 0.0.40
codegen_flags: <defaults>
</compile_context>

<pallas_src>
import jax
import jax.numpy as jnp
from jax import lax
from jax.experimental import pallas as pl
from jax.experimental.pallas import tpu as pltpu


_CENTER_TAP = 13                      # (kd, kh, kw) = (1, 1, 1)
_W_RESIDENT_MAX_BYTES = 6 * 1024 * 1024


def _round_up(x, m):
    return (x + m - 1) // m * m


def _vmem_limit_bytes():
    """Generation-aware VMEM budget: ~70% of physical, capped at 96 MiB.

    v5e/v6e (128 MiB physical) -> ~90 MiB; v7x (64 MiB per TC) -> ~44 MiB.
    """
    cap = 64 * 1024 * 1024
    try:
        cap = int(pltpu.get_tpu_info().vmem_capacity_bytes)
    except Exception:
        pass
    if cap < 32 * 1024 * 1024:
        cap = 64 * 1024 * 1024
    return min(96 * 1024 * 1024, int(cap * 0.7))


# ----------------------------------------------------------------------------
# Pallas kernel: tiled GEMM  y = [relu]( (x @ w) * scale + bias [+ residual] )
# The f32 output block doubles as the accumulator across the K grid axis.
# ----------------------------------------------------------------------------
def _make_gemm_bn_kernel(apply_relu, with_residual, single_k, w_slice_tk=None):
    def kernel(*refs):
        if with_residual:
            x_ref, w_ref, scale_ref, bias_ref, res_ref, out_ref = refs
        else:
            x_ref, w_ref, scale_ref, bias_ref, out_ref = refs
            res_ref = None

        def epilogue(y):
            y = y * scale_ref[...] + bias_ref[...]
            if with_residual:
                y = y + res_ref[...].astype(jnp.float32)
            if apply_relu:
                y = jnp.maximum(y, 0.0)
            return y

        if single_k:
            acc = jnp.dot(x_ref[...], w_ref[...],
                          preferred_element_type=jnp.float32)
            out_ref[...] = epilogue(acc)
            return

        kidx = pl.program_id(1)

        if w_slice_tk is not None:
            # Weight slab is fully VMEM-resident; slice the current K chunk.
            start = pl.multiple_of(kidx * w_slice_tk, 128)
            w_blk = w_ref[pl.ds(start, w_slice_tk), :]
        else:
            w_blk = w_ref[...]

        @pl.when(kidx == 0)
        def _init():
            out_ref[...] = jnp.zeros_like(out_ref)

        out_ref[...] += jnp.dot(x_ref[...], w_blk,
                                preferred_element_type=jnp.float32)

        @pl.when(kidx == pl.num_programs(1) - 1)
        def _finalize():
            out_ref[...] = epilogue(out_ref[...])

    return kernel


def _pick_tile_m(m, per_row_bytes, budget_bytes):
    """Largest row tile (512..64, multiples of 8, never < 64) that fits the VMEM
    budget and minimizes padded rows."""
    cands = [tm for tm in (512, 256, 128, 64) if tm * per_row_bytes <= budget_bytes]
    if not cands:
        cands = [64]
    best_tm, best_rows = None, None
    for tm in cands:                    # descending; strict '<' keeps larger tile on ties
        rows = _round_up(m, tm)
        if best_rows is None or rows < best_rows:
            best_tm, best_rows = tm, rows
    return best_tm


def _gemm_bn(x, w, scale, bias, relu, residual=None):
    """y = [relu]((x @ w) * scale + bias [+ residual]); f32 accumulate/epilogue.

    x: (M, K) bf16/f32, w: (K, Cout) same dtype, scale/bias: (1, Cout) f32,
    residual: (M, Cout) f32 or None.  Returns (M, Cout) f32.
    """
    m, k = x.shape
    cout = w.shape[-1]
    xbytes = jnp.dtype(x.dtype).itemsize
    wbytes = jnp.dtype(w.dtype).itemsize
    scale = scale.astype(jnp.float32).reshape(1, cout)
    bias = bias.astype(jnp.float32).reshape(1, cout)

    vmem_limit = _vmem_limit_bytes()
    budget = int(vmem_limit * 0.6)

    # ---- K handling: keep K whole when small; else pad to a multiple of 128
    # and pick the tile width with minimal padding waste.
    k_whole_max = 4096 if xbytes <= 2 else 2048
    if k <= k_whole_max:
        tk, k_pad, k_tiles = k, k, 1
    else:
        tk, k_pad = None, None
        for cand in (1024, 896, 768, 640, 512, 384, 256):   # all multiples of 128
            kp = _round_up(k, cand)
            if k_pad is None or kp < k_pad:
                tk, k_pad = cand, kp
        k_tiles = k_pad // tk

    if k_pad != k:
        x = jnp.pad(x, ((0, 0), (0, k_pad - k)))
        w = jnp.pad(w, ((0, k_pad - k), (0, 0)))

    # ---- Weight residency: single full-K block (one DMA, stays in VMEM) when
    # it fits; only stream per-K blocks for very large K*Cout.
    w_total_bytes = k_pad * cout * wbytes
    w_resident = (k_tiles == 1) or (w_total_bytes <= _W_RESIDENT_MAX_BYTES)
    if w_resident:
        w_spec = pl.BlockSpec((k_pad, cout), lambda i, j: (0, 0))
        w_vmem = 2 * w_total_bytes
        w_slice_tk = tk if k_tiles > 1 else None
    else:
        w_spec = pl.BlockSpec((tk, cout), lambda i, j: (j, 0))
        w_vmem = 2 * tk * cout * wbytes
        w_slice_tk = None

    # ---- Row tiling sized to the VMEM budget (double-buffered blocks).
    per_row = 2 * tk * xbytes + 2 * cout * 4
    if residual is not None:
        per_row += 2 * cout * 4
    tm = _pick_tile_m(m, per_row, budget - w_vmem - 8 * cout * 4)
    m_pad = _round_up(m, tm)
    if m_pad != m:
        x = jnp.pad(x, ((0, m_pad - m), (0, 0)))
        if residual is not None:
            residual = jnp.pad(residual, ((0, m_pad - m), (0, 0)))
    m_tiles = m_pad // tm

    kernel = _make_gemm_bn_kernel(
        apply_relu=relu, with_residual=residual is not None,
        single_k=(k_tiles == 1), w_slice_tk=w_slice_tk)

    in_specs = [
        pl.BlockSpec((tm, tk), lambda i, j: (i, j)),
        w_spec,
        pl.BlockSpec((1, cout), lambda i, j: (0, 0)),
        pl.BlockSpec((1, cout), lambda i, j: (0, 0)),
    ]
    args = [x, w, scale, bias]
    if residual is not None:
        in_specs.append(pl.BlockSpec((tm, cout), lambda i, j: (i, 0)))
        args.append(residual.astype(jnp.float32))

    y = pl.pallas_call(
        kernel,
        out_shape=jax.ShapeDtypeStruct((m_pad, cout), jnp.float32),
        grid=(m_tiles, k_tiles),
        in_specs=in_specs,
        out_specs=pl.BlockSpec((tm, cout), lambda i, j: (i, 0)),
        compiler_params=pltpu.CompilerParams(
            dimension_semantics=("parallel", "arbitrary"),
            vmem_limit_bytes=vmem_limit),
    )(*args)

    if m_pad != m:
        y = y[:m]
    return y


# ----------------------------------------------------------------------------
# Strided im2col (valid pad-1 output positions only), tap-major columns.
# TODO(synk): replace with an in-kernel halo gather (manual DMA) to cut the
#             ~27x activation read amplification.
# ----------------------------------------------------------------------------
def _im2col_3x3x3(x, stride):
    n, d, h, w, c = x.shape
    do = (d - 1) // stride + 1
    ho = (h - 1) // stride + 1
    wo = (w - 1) // stride + 1
    xp = jnp.pad(x, ((0, 0), (1, 1), (1, 1), (1, 1), (0, 0)))
    taps = []
    for kd in range(3):
        for kh in range(3):
            for kw in range(3):
                taps.append(
                    xp[:,
                       kd:kd + (do - 1) * stride + 1:stride,
                       kh:kh + (ho - 1) * stride + 1:stride,
                       kw:kw + (wo - 1) * stride + 1:stride, :])
    patches = jnp.stack(taps, axis=-2)               # (N, Do, Ho, Wo, 27, C)
    return patches.reshape(n * do * ho * wo, 27 * c), (n, do, ho, wo)


# ----------------------------------------------------------------------------
# BasicBlock3dV2 forward (NDHWC).  BN is eval-mode (running stats folded).
# ----------------------------------------------------------------------------
def basic_block3d_v2(x, params, stride=1, compute_dtype=jnp.bfloat16):
    n, d, h, wdim, cin = x.shape
    cout = params["w1"].shape[-1]

    xc = x.astype(compute_dtype)
    patches1, (n, do, ho, wo) = _im2col_3x3x3(xc, stride)
    w1 = params["w1"].reshape(27 * cin, cout).astype(compute_dtype)
    out = _gemm_bn(patches1, w1, params["scale1"], params["bias1"], relu=True)

    if stride != 1:
        # Downsample (1x1x1, stride s): the centre-tap columns of the conv1
        # patch matrix are exactly x[::s, ::s, ::s] flattened, so no second
        # strided gather over x in HBM is needed.
        center = patches1[:, _CENTER_TAP * cin:(_CENTER_TAP + 1) * cin]
        w_ds = params["w_ds"].reshape(cin, cout).astype(compute_dtype)
        identity = _gemm_bn(center, w_ds, params["scale_ds"], params["bias_ds"],
                            relu=False)
    else:
        assert cin == cout, (
            "stride=1 identity path requires in_channels == out_channels")
        identity = x.reshape(n * do * ho * wo, cout).astype(jnp.float32)

    out5 = out.reshape(n, do, ho, wo, cout).astype(compute_dtype)
    patches2, _ = _im2col_3x3x3(out5, 1)
    w2 = params["w2"].reshape(27 * cout, cout).astype(compute_dtype)
    y = _gemm_bn(patches2, w2, params["scale2"], params["bias2"], relu=True,
                 residual=identity)
    return y.reshape(n, do, ho, wo, cout)


# ----------------------------------------------------------------------------
# Deterministic parameters (BN folded to scale/bias, eps=1e-5, eval mode)
# ----------------------------------------------------------------------------
def init_params(key, cin, cout, stride, dtype=jnp.float32):
    ks = jax.random.split(key, 3)
    eps = 1e-5

    def bn(c, shift):
        gamma = 1.0 + 0.01 * jnp.arange(c, dtype=jnp.float32)
        beta = 0.02 * jnp.arange(c, dtype=jnp.float32) - 0.01 * shift
        mean = 0.03 * jnp.arange(c, dtype=jnp.float32) + 0.01 * shift
        var = 1.0 + 0.05 * jnp.arange(c, dtype=jnp.float32)
        scale = gamma / jnp.sqrt(var + eps)
        bias = beta - mean * scale
        return scale[None, :], bias[None, :]

    p = {}
    p["w1"] = 0.1 * jax.random.normal(ks[0], (3, 3, 3, cin, cout), dtype)
    p["scale1"], p["bias1"] = bn(cout, 1)
    p["w2"] = 0.1 * jax.random.normal(ks[1], (3, 3, 3, cout, cout), dtype)
    p["scale2"], p["bias2"] = bn(cout, 2)
    if stride != 1:
        p["w_ds"] = 0.1 * jax.random.normal(ks[2], (1, 1, 1, cin, cout), dtype)
        p["scale_ds"], p["bias_ds"] = bn(cout, 3)
    return p


# ----------------------------------------------------------------------------
# Pure-JAX reference (lax.conv_general_dilated) for validation
# ----------------------------------------------------------------------------
def ref_forward(x, p, stride, compute_dtype=jnp.float32):
    prec = (lax.Precision.HIGHEST if compute_dtype == jnp.float32
            else lax.Precision.DEFAULT)

    def conv(a, w, s, pad):
        return lax.conv_general_dilated(
            a.astype(compute_dtype), w.astype(compute_dtype),
            (s, s, s), [(pad, pad)] * 3,
            dimension_numbers=("NDHWC", "DHWIO", "NDHWC"),
            preferred_element_type=jnp.float32,
            precision=prec)

    out = conv(x, p["w1"], stride, 1)
    out = out * p["scale1"] + p["bias1"]
    out = jnp.maximum(out, 0.0)
    out = conv(out, p["w2"], 1, 1)
    out = out * p["scale2"] + p["bias2"]
    if stride != 1:
        identity = conv(x, p["w_ds"], stride, 0)
        identity = identity * p["scale_ds"] + p["bias_ds"]
    else:
        identity = x.astype(jnp.float32)
    return jnp.maximum(out + identity, 0.0)


def _check(name, got, want, atol, rtol):
    if got.shape != want.shape:
        raise AssertionError(f"{name}: shape {got.shape} != {want.shape}")
    if not bool(jnp.allclose(got, want, atol=atol, rtol=rtol)):
        err = float(jnp.max(jnp.abs(got - want)))
        raise AssertionError(f"{name}: mismatch, max abs err = {err}")


if __name__ == "__main__":
    key = jax.random.PRNGKey(0)
    kx1, kx2, kp1, kp2, kg1, kg2, kg3 = jax.random.split(key, 7)

    fwd = jax.jit(basic_block3d_v2, static_argnames=("stride", "compute_dtype"))

    # Case 1: stride=1, Cin=Cout=8 (identity skip), x: (N=2, D=8, H=8, W=8, C=8)
    x1 = jax.random.normal(kx1, (2, 8, 8, 8, 8), jnp.float32)
    p1 = init_params(kp1, 8, 8, stride=1)
    # Case 2: stride=2 with 1x1x1 downsample branch, Cin=8 -> Cout=16
    x2 = jax.random.normal(kx2, (2, 8, 8, 8, 8), jnp.float32)
    p2 = init_params(kp2, 8, 16, stride=2)

    # f32 operands: exact structural check of the fused GEMM/BN/residual/ReLU.
    out1_f32 = fwd(x1, p1, stride=1, compute_dtype=jnp.float32)
    _check("stride1_f32", out1_f32, ref_forward(x1, p1, 1, jnp.float32), 1e-3, 1e-3)
    out2_f32 = fwd(x2, p2, stride=2, compute_dtype=jnp.float32)
    _check("stride2_f32", out2_f32, ref_forward(x2, p2, 2, jnp.float32), 1e-3, 1e-3)

    # bf16 MXU operands (the performance configuration) vs a bf16-operand,
    # f32-accumulating reference (mixed-precision parity check).
    out1 = fwd(x1, p1, stride=1, compute_dtype=jnp.bfloat16)
    _check("stride1_bf16", out1, ref_forward(x1, p1, 1, jnp.bfloat16), 2e-2, 2e-2)
    out2 = fwd(x2, p2, stride=2, compute_dtype=jnp.bfloat16)
    _check("stride2_bf16", out2, ref_forward(x2, p2, 2, jnp.bfloat16), 2e-2, 2e-2)

    # Directly exercise the K-tiled / resident-weight GEMM path (K > whole-K cap).
    mg, kdim, cg = 256, 27 * 192, 128
    xg = (0.1 * jax.random.normal(kg1, (mg, kdim), jnp.float32)).astype(jnp.bfloat16)
    wg = (0.05 * jax.random.normal(kg2, (kdim, cg), jnp.float32)).astype(jnp.bfloat16)
    sg = jnp.full((1, cg), 0.9, jnp.float32)
    bg = jnp.full((1, cg), 0.1, jnp.float32)
    rg = jax.random.normal(kg3, (mg, cg), jnp.float32)
    got = _gemm_bn(xg, wg, sg, bg, relu=True, residual=rg)
    want = jnp.maximum(
        jnp.dot(xg.astype(jnp.float32), wg.astype(jnp.float32)) * sg + bg + rg, 0.0)
    _check("gemm_ktiled", got, want, 5e-3, 5e-3)

    jax.block_until_ready((out1_f32, out2_f32, out1, out2, got))
    print("KERNEL_OK")
</pallas_src>

<mosaic_0001>
module attributes {stable_mosaic.version = 11 : i64} {
  func.func @kernel(%arg0: i32, %arg1: i32, %arg2: memref<512x216xf32, #tpu.memory_space<vmem>>, %arg3: memref<216x8xf32, #tpu.memory_space<vmem>>, %arg4: memref<1x8xf32, #tpu.memory_space<vmem>>, %arg5: memref<1x8xf32, #tpu.memory_space<vmem>>, %arg6: memref<512x8xf32, #tpu.memory_space<vmem>>) attributes {dimension_semantics = [#tpu.dimension_semantics<parallel>, #tpu.dimension_semantics<arbitrary>], iteration_bounds = array<i64: 2, 1>, scalar_prefetch = 0 : i64, scratch_operands = 0 : i64, tpu.core_type = #tpu.core_type<tc>, window_params = [{transform_indices = @transform_0, window_bounds = array<i64: 512, 216>}, {pipeline_mode = #tpu.pipeline_mode<synchronous>, transform_indices = @transform_1, window_bounds = array<i64: 216, 8>}, {pipeline_mode = #tpu.pipeline_mode<synchronous>, transform_indices = @transform_2, window_bounds = array<i64: 1, 8>}, {pipeline_mode = #tpu.pipeline_mode<synchronous>, transform_indices = @transform_3, window_bounds = array<i64: 1, 8>}, {transform_indices = @transform_4, window_bounds = array<i64: 512, 8>}]} {
    %c0 = arith.constant 0 : index
    %c0_0 = arith.constant 0 : index
    %0 = vector.load %arg2[%c0, %c0_0] : memref<512x216xf32, #tpu.memory_space<vmem>>, vector<512x216xf32>
    %c0_1 = arith.constant 0 : index
    %c0_2 = arith.constant 0 : index
    %1 = vector.load %arg3[%c0_1, %c0_2] : memref<216x8xf32, #tpu.memory_space<vmem>>, vector<216x8xf32>
    %cst = arith.constant dense<0.000000e+00> : vector<512x8xf32>
    %2 = tpu.matmul %0, %1, %cst {dimension_numbers = #tpu.dot_dimension_numbers<[1], [0], [0], [1], [0, 0, 1, 1], [], []>} : vector<512x216xf32>, vector<216x8xf32>, vector<512x8xf32> -> vector<512x8xf32>
    %c0_3 = arith.constant 0 : index
    %c0_4 = arith.constant 0 : index
    %3 = vector.load %arg4[%c0_3, %c0_4] : memref<1x8xf32, #tpu.memory_space<vmem>>, vector<1x8xf32>
    %4 = vector.broadcast %3 : vector<1x8xf32> to vector<512x8xf32>
    %5 = arith.mulf %2, %4 : vector<512x8xf32>
    %c0_5 = arith.constant 0 : index
    %c0_6 = arith.constant 0 : index
    %6 = vector.load %arg5[%c0_5, %c0_6] : memref<1x8xf32, #tpu.memory_space<vmem>>, vector<1x8xf32>
    %7 = vector.broadcast %6 : vector<1x8xf32> to vector<512x8xf32>
    %8 = arith.addf %5, %7 : vector<512x8xf32>
    %cst_7 = arith.constant 0.000000e+00 : f32
    %9 = vector.broadcast %cst_7 : f32 to vector<512x8xf32>
    %10 = arith.maximumf %8, %9 : vector<512x8xf32>
    %c0_8 = arith.constant 0 : index
    %c0_9 = arith.constant 0 : index
    %11 = vector.load %arg6[%c0_8, %c0_9] : memref<512x8xf32, #tpu.memory_space<vmem>>, vector<512x8xf32>
    tpu.vector_store %arg6[%c0_8, %c0_9], %10 {strides = array<i32>} : memref<512x8xf32, #tpu.memory_space<vmem>>, vector<512x8xf32>,
    return
  }
  func.func @transform_0(%arg0: i32, %arg1: i32) -> (i32, i32) {
    %c0_i32 = arith.constant 0 : i32
    return %arg0, %arg1 : i32, i32
  }
  func.func @transform_1(%arg0: i32, %arg1: i32) -> (i32, i32) {
    %c0_i32 = arith.constant 0 : i32
    %c0_i32_0 = arith.constant 0 : i32
    %c0_i32_1 = arith.constant 0 : i32
    return %c0_i32, %c0_i32_0 : i32, i32
  }
  func.func @transform_2(%arg0: i32, %arg1: i32) -> (i32, i32) {
    %c0_i32 = arith.constant 0 : i32
    %c0_i32_0 = arith.constant 0 : i32
    %c0_i32_1 = arith.constant 0 : i32
    return %c0_i32, %c0_i32_0 : i32, i32
  }
  func.func @transform_3(%arg0: i32, %arg1: i32) -> (i32, i32) {
    %c0_i32 = arith.constant 0 : i32
    %c0_i32_0 = arith.constant 0 : i32
    %c0_i32_1 = arith.constant 0 : i32
    return %c0_i32, %c0_i32_0 : i32, i32
  }
  func.func @transform_4(%arg0: i32, %arg1: i32) -> (i32, i32) {
    %c0_i32 = arith.constant 0 : i32
    %c0_i32_0 = arith.constant 0 : i32
    return %arg0, %c0_i32 : i32, i32
  }
}

module attributes {stable_mosaic.version = 11 : i64} {
  func.func @kernel(%arg0: i32, %arg1: i32, %arg2: memref<512x216xf32, #tpu.memory_space<vmem>>, %arg3: memref<216x8xf32, #tpu.memory_space<vmem>>, %arg4: memref<1x8xf32, #tpu.memory_space<vmem>>, %arg5: memref<1x8xf32, #tpu.memory_space<vmem>>, %arg6: memref<512x8xf32, #tpu.memory_space<vmem>>, %arg7: memref<512x8xf32, #tpu.memory_space<vmem>>) attributes {dimension_semantics = [#tpu.dimension_semantics<parallel>, #tpu.dimension_semantics<arbitrary>], iteration_bounds = array<i64: 2, 1>, scalar_prefetch = 0 : i64, scratch_operands = 0 : i64, tpu.core_type = #tpu.core_type<tc>, window_params = [{transform_indices = @transform_0, window_bounds = array<i64: 512, 216>}, {pipeline_mode = #tpu.pipeline_mode<synchronous>, transform_indices = @transform_1, window_bounds = array<i64: 216, 8>}, {pipeline_mode = #tpu.pipeline_mode<synchronous>, transform_indices = @transform_2, window_bounds = array<i64: 1, 8>}, {pipeline_mode = #tpu.pipeline_mode<synchronous>, transform_indices = @transform_3, window_bounds = array<i64: 1, 8>}, {transform_indices = @transform_4, window_bounds = array<i64: 512, 8>}, {transform_indices = @transform_5, window_bounds = array<i64: 512, 8>}]} {
    %c0 = arith.constant 0 : index
    %c0_0 = arith.constant 0 : index
    %0 = vector.load %arg2[%c0, %c0_0] : memref<512x216xf32, #tpu.memory_space<vmem>>, vector<512x216xf32>
    %c0_1 = arith.constant 0 : index
    %c0_2 = arith.constant 0 : index
    %1 = vector.load %arg3[%c0_1, %c0_2] : memref<216x8xf32, #tpu.memory_space<vmem>>, vector<216x8xf32>
    %cst = arith.constant dense<0.000000e+00> : vector<512x8xf32>
    %2 = tpu.matmul %0, %1, %cst {dimension_numbers = #tpu.dot_dimension_numbers<[1], [0], [0], [1], [0, 0, 1, 1], [], []>} : vector<512x216xf32>, vector<216x8xf32>, vector<512x8xf32> -> vector<512x8xf32>
    %c0_3 = arith.constant 0 : index
    %c0_4 = arith.constant 0 : index
    %3 = vector.load %arg4[%c0_3, %c0_4] : memref<1x8xf32, #tpu.memory_space<vmem>>, vector<1x8xf32>
    %4 = vector.broadcast %3 : vector<1x8xf32> to vector<512x8xf32>
    %5 = arith.mulf %2, %4 : vector<512x8xf32>
    %c0_5 = arith.constant 0 : index
    %c0_6 = arith.constant 0 : index
    %6 = vector.load %arg5[%c0_5, %c0_6] : memref<1x8xf32, #tpu.memory_space<vmem>>, vector<1x8xf32>
    %7 = vector.broadcast %6 : vector<1x8xf32> to vector<512x8xf32>
    %8 = arith.addf %5, %7 : vector<512x8xf32>
    %c0_7 = arith.constant 0 : index
    %c0_8 = arith.constant 0 : index
    %9 = vector.load %arg6[%c0_7, %c0_8] : memref<512x8xf32, #tpu.memory_space<vmem>>, vector<512x8xf32>
    %10 = arith.addf %8, %9 : vector<512x8xf32>
    %cst_9 = arith.constant 0.000000e+00 : f32
    %11 = vector.broadcast %cst_9 : f32 to vector<512x8xf32>
    %12 = arith.maximumf %10, %11 : vector<512x8xf32>
    %c0_10 = arith.constant 0 : index
    %c0_11 = arith.constant 0 : index
    %13 = vector.load %arg7[%c0_10, %c0_11] : memref<512x8xf32, #tpu.memory_space<vmem>>, vector<512x8xf32>
    tpu.vector_store %arg7[%c0_10, %c0_11], %12 {strides = array<i32>} : memref<512x8xf32, #tpu.memory_space<vmem>>, vector<512x8xf32>,
    return
  }
  func.func @transform_0(%arg0: i32, %arg1: i32) -> (i32, i32) {
    %c0_i32 = arith.constant 0 : i32
    return %arg0, %arg1 : i32, i32
  }
  func.func @transform_1(%arg0: i32, %arg1: i32) -> (i32, i32) {
    %c0_i32 = arith.constant 0 : i32
    %c0_i32_0 = arith.constant 0 : i32
    %c0_i32_1 = arith.constant 0 : i32
    return %c0_i32, %c0_i32_0 : i32, i32
  }
  func.func @transform_2(%arg0: i32, %arg1: i32) -> (i32, i32) {
    %c0_i32 = arith.constant 0 : i32
    %c0_i32_0 = arith.constant 0 : i32
    %c0_i32_1 = arith.constant 0 : i32
    return %c0_i32, %c0_i32_0 : i32, i32
  }
  func.func @transform_3(%arg0: i32, %arg1: i32) -> (i32, i32) {
    %c0_i32 = arith.constant 0 : i32
    %c0_i32_0 = arith.constant 0 : i32
    %c0_i32_1 = arith.constant 0 : i32
    return %c0_i32, %c0_i32_0 : i32, i32
  }
  func.func @transform_4(%arg0: i32, %arg1: i32) -> (i32, i32) {
    %c0_i32 = arith.constant 0 : i32
    %c0_i32_0 = arith.constant 0 : i32
    return %arg0, %c0_i32 : i32, i32
  }
  func.func @transform_5(%arg0: i32, %arg1: i32) -> (i32, i32) {
    %c0_i32 = arith.constant 0 : i32
    %c0_i32_0 = arith.constant 0 : i32
    return %arg0, %c0_i32 : i32, i32
  }
}

</mosaic_0001>

<llo_original>
// kernel: basic_block3d_v2.2
$region0: #{basic_block3d_v2.2}
  #allocation0 [shape = 'u32[]', space=smem, size = 0x4, offset = 0x4, fixed_abs, tag = 'smem constant byte address 0x4 - core index']
  #allocation1 [shape = 'u32[72,128]{1,0:T(1,128)}', space=vmem, size = 0x9000, scoped, tag = 'internal scratch']
  %s0 = inlined_call_operand.vmem [shape: f32[1024,216], index: 0, kind: input, shape index: {}]
  %s1 = inlined_call_operand.vmem [shape: f32[216,8], index: 1, kind: input, shape index: {}]
  %s2 = inlined_call_operand.vmem [shape: f32[1,8], index: 2, kind: input, shape index: {}]
  %s3 = inlined_call_operand.vmem [shape: f32[1,8], index: 3, kind: input, shape index: {}]
  %s4 = inlined_call_operand.vmem [shape: f32[1024,8], index: 4, kind: output, shape index: {}]
  %s5 = sld [smem:[#allocation0]]
  $region49: #{basic_block3d_v2.2} parent=0
    _
  %s7 = ssub.s32 1, %s5
  %s8 = scalar_select 0, %s7, %s5
  loop: start=0, step=1, limit=4
  $region2: #{basic_block3d_v2.2} parent=0 // loop_pre_header
    _
  $region3: #{basic_block3d_v2.2} parent=0 // loop_header
    %s10 = sphi 0, %s14
    %p11 = scmp.ge.s32.totalorder %s10, 4
    %s17 = sphi 0, %s29
    %s18 = sphi 0, %s25
    %s19 = sphi 0, %s17
    %s20 = sphi 0, %s18
    %s21 = sphi 0, %s19
    %s22 = sphi 0, %s20
    %s34 = sphi 0, %s36
    %s37 = sphi 0, %s34
    %s38 = sphi 0, %s37
    %s54 = sphi 0, %s38
    %s58 = sphi 0, %s58
    %s60 = sphi 0, %s58
    %s61 = sphi 0, %s60
    %s75 = sphi 0, %s61
    %s79 = sphi 0, %s79
    %s81 = sphi 0, %s79
    %s82 = sphi 0, %s81
    %s96 = sphi 0, %s82
    %s100 = sphi 0, %s100
    %s102 = sphi 0, %s100
    %s103 = sphi 0, %s102
    %s117 = sphi 0, %s103
    %s123 = sphi 0, %s125
    %s126 = sphi 0, %s123
    %s127 = sphi 0, %s126
    %s143 = sphi 0, %s127
  $region4: #{basic_block3d_v2.2} parent=0 // loop_header_branch
    %13 = sbr.rel (%p11) target = $region8
  $region5: #{basic_block3d_v2.2} parent=0 // loop_body
    %s15 = ssub.s32 %s10, 1
    %s16 = ssub.s32 %s10, 2
    %s23 = sadd.s32 1, %s18
    %p24 = scmp.ge.s32.totalorder %s23, 1
    %s25 = scalar_select %p24, 0, %s23
    %s26 = sadd.s32 1, %s17
    %s27 = scalar_select %p24, %s26, %s17
    %p28 = scmp.ge.s32.totalorder %s27, 2
    %s29 = scalar_select %p28, 0, %s27
    %s30 = ssub.s32 %s17, %s29
    %s31 = ssub.s32 %s18, %s25
    %s32 = sor.u32 %s30, %s31
    %p33 = scmp.eq.s32.totalorder %s32, 0
    %s35 = sadd.s32 %s34, 1
    %s36 = scalar_select %p33, %s34, %s35
    %p39 = pneg %p33
    %p40 = scmp.eq.s32.totalorder %s10, 1
    %p41 = por %p39, %p40
    %p42 = scmp.ne.s32.totalorder %s34, %s37
    %p43 = scmp.eq.s32.totalorder %s10, 0
    %p44 = por %p42, %p43
    %p45 = scmp.ne.s32.totalorder %s34, %s37
    %p46 = scmp.eq.s32.totalorder %s15, 1
    %p47 = por %p45, %p46
    %p48 = scmp.ne.s32.totalorder %s37, %s38
    %p49 = scmp.eq.s32.totalorder %s15, 0
    %p50 = por %p48, %p49
    %p51 = scmp.ne.s32.totalorder %s37, %s38
    %p52 = scmp.eq.s32.totalorder %s16, 1
    %p53 = por %p51, %p52
    %p55 = scmp.ne.s32.totalorder %s38, %s54
    %p56 = scmp.eq.s32.totalorder %s16, 0
    %p57 = por %p55, %p56
    %s59 = sadd.s32 %s58, 1
    %p62 = scmp.eq.s32.totalorder %s10, 1
    %p63 = scmp.ne.s32.totalorder %s58, %s60
    %p64 = scmp.eq.s32.totalorder %s10, 0
    %p65 = por %p63, %p64
    %p66 = scmp.ne.s32.totalorder %s58, %s60
    %p67 = scmp.eq.s32.totalorder %s15, 1
    %p68 = por %p66, %p67
    %p69 = scmp.ne.s32.totalorder %s60, %s61
    %p70 = scmp.eq.s32.totalorder %s15, 0
    %p71 = por %p69, %p70
    %p72 = scmp.ne.s32.totalorder %s60, %s61
    %p73 = scmp.eq.s32.totalorder %s16, 1
    %p74 = por %p72, %p73
    %p76 = scmp.ne.s32.totalorder %s61, %s75
    %p77 = scmp.eq.s32.totalorder %s16, 0
    %p78 = por %p76, %p77
    %s80 = sadd.s32 %s79, 1
    %p83 = scmp.eq.s32.totalorder %s10, 1
    %p84 = scmp.ne.s32.totalorder %s79, %s81
    %p85 = scmp.eq.s32.totalorder %s10, 0
    %p86 = por %p84, %p85
    %p87 = scmp.ne.s32.totalorder %s79, %s81
    %p88 = scmp.eq.s32.totalorder %s15, 1
    %p89 = por %p87, %p88
    %p90 = scmp.ne.s32.totalorder %s81, %s82
    %p91 = scmp.eq.s32.totalorder %s15, 0
    %p92 = por %p90, %p91
    %p93 = scmp.ne.s32.totalorder %s81, %s82
    %p94 = scmp.eq.s32.totalorder %s16, 1
    %p95 = por %p93, %p94
    %p97 = scmp.ne.s32.totalorder %s82, %s96
    %p98 = scmp.eq.s32.totalorder %s16, 0
    %p99 = por %p97, %p98
    %s101 = sadd.s32 %s100, 1
    %p104 = scmp.eq.s32.totalorder %s10, 1
    %p105 = scmp.ne.s32.totalorder %s100, %s102
    %p106 = scmp.eq.s32.totalorder %s10, 0
    %p107 = por %p105, %p106
    %p108 = scmp.ne.s32.totalorder %s100, %s102
    %p109 = scmp.eq.s32.totalorder %s15, 1
    %p110 = por %p108, %p109
    %p111 = scmp.ne.s32.totalorder %s102, %s103
    %p112 = scmp.eq.s32.totalorder %s15, 0
    %p113 = por %p111, %p112
    %p114 = scmp.ne.s32.totalorder %s102, %s103
    %p115 = scmp.eq.s32.totalorder %s16, 1
    %p116 = por %p114, %p115
    %p118 = scmp.ne.s32.totalorder %s103, %s117
    %p119 = scmp.eq.s32.totalorder %s16, 0
    %p120 = por %p118, %p119
    %s121 = ssub.s32 %s17, %s29
    %p122 = scmp.eq.s32.totalorder %s121, 0
    %s124 = sadd.s32 %s123, 1
    %s125 = scalar_select %p122, %s123, %s124
    %p128 = pneg %p122
    %p129 = scmp.eq.s32.totalorder %s10, 1
    %p130 = por %p128, %p129
    %p131 = scmp.ne.s32.totalorder %s123, %s126
    %p132 = scmp.eq.s32.totalorder %s10, 0
    %p133 = por %p131, %p132
    %p134 = scmp.ne.s32.totalorder %s123, %s126
    %p135 = scmp.eq.s32.totalorder %s15, 1
    %p136 = por %p134, %p135
    %p137 = scmp.ne.s32.totalorder %s126, %s127
    %p138 = scmp.eq.s32.totalorder %s15, 0
    %p139 = por %p137, %p138
    %p140 = scmp.ne.s32.totalorder %s126, %s127
    %p141 = scmp.eq.s32.totalorder %s16, 1
    %p142 = por %p140, %p141
    %p144 = scmp.ne.s32.totalorder %s127, %s143
    %p145 = scmp.eq.s32.totalorder %s16, 0
    %p146 = por %p144, %p145
    %p147 = scmp.le.s32.totalorder 1, %s10
    %p148 = scmp.lt.s32.totalorder %s10, 3
    %p149 = pnand %p147, %p148
    %p150 = pneg %p149
    // Predicated region
    $region9: #{basic_block3d_v2.2} parent=5 // pred_check
      _
    $region10: #{basic_block3d_v2.2} parent=5 // pred_check_branch
      %152 = sbr.rel (%p149) target = $region12
    $region11: #{basic_block3d_v2.2} parent=5 // pred_region
      %s153 = ssub.s32 %s10, 1
      // Predicated region
      $region13: #{basic_block3d_v2.2} parent=11 // pred_check
        %p154 = pneg %p71
      $region14: #{basic_block3d_v2.2} parent=11 // pred_check_branch
        %156 = sbr.rel (%p154) target = $region16
      $region15: #{basic_block3d_v2.2} parent=11 // pred_region
        _
      $region16: #{basic_block3d_v2.2} parent=11 // pred_fallthru
        _
      // Predicated region
      $region17: #{basic_block3d_v2.2} parent=11 // pred_check
        %p157 = pneg %p92
      $region18: #{basic_block3d_v2.2} parent=11 // pred_check_branch
        %159 = sbr.rel (%p157) target = $region20
      $region19: #{basic_block3d_v2.2} parent=11 // pred_region
        _
      $region20: #{basic_block3d_v2.2} parent=11 // pred_fallthru
        _
      // Predicated region
      $region21: #{basic_block3d_v2.2} parent=11 // pred_check
        %p160 = pneg %p113
      $region22: #{basic_block3d_v2.2} parent=11 // pred_check_branch
        %162 = sbr.rel (%p160) target = $region24
      $region23: #{basic_block3d_v2.2} parent=11 // pred_region
        _
      $region24: #{basic_block3d_v2.2} parent=11 // pred_fallthru
        _
    $region12: #{basic_block3d_v2.2} parent=5 // pred_fallthru
      _
    %p163 = scmp.lt.s32.totalorder %s10, 2
    // Predicated region
    $region25: #{basic_block3d_v2.2} parent=5 // pred_check
      %p164 = pneg %p163
    $region26: #{basic_block3d_v2.2} parent=5 // pred_check_branch
      %166 = sbr.rel (%p164) target = $region28
    $region27: #{basic_block3d_v2.2} parent=5 // pred_region
      // Predicated region
      $region29: #{basic_block3d_v2.2} parent=27 // pred_check
        %p167 = pneg %p44
      $region30: #{basic_block3d_v2.2} parent=27 // pred_check_branch
        %169 = sbr.rel (%p167) target = $region32
      $region31: #{basic_block3d_v2.2} parent=27 // pred_region
        %s170 = smul.u32 64, %s17
        %s171 = smul.u32 2, %s18
        %p172 = scmp.lt.s32.totalorder %s170, 127
        %s173 = scalar_select %p172, %s170, 127
        %p174 = scmp.lt.s32.totalorder %s171, 1
        %s175 = scalar_select %p174, %s171, 1
        %s176 = smul.addr %s173, 2
        %s177 = sadd.s32 %s175, %s176
        %s178 = smul.addr %s177, 8
        %s179 = scalar_lea.vmem %s0, %s178
        %s180 = smul.u32 64, %s17
        %s181 = smul.u32 2, %s18
      $region32: #{basic_block3d_v2.2} parent=27 // pred_fallthru
        _
    $region28: #{basic_block3d_v2.2} parent=5 // pred_fallthru
      _
    %p182 = scmp.le.s32.totalorder 1, %s10
    %p183 = scmp.lt.s32.totalorder %s10, 3
    %p184 = pnand %p182, %p183
    %p185 = pneg %p184
    // Predicated region
    $region33: #{basic_block3d_v2.2} parent=5 // pred_check
      _
    $region34: #{basic_block3d_v2.2} parent=5 // pred_check_branch
      %187 = sbr.rel (%p184) target = $region36
    $region35: #{basic_block3d_v2.2} parent=5 // pred_region
      %s188 = ssub.s32 %s10, 1
      %s189 = smul.u32 64, %s19
      %s190 = smul.u32 2, %s20
      %p191 = scmp.lt.s32.totalorder %s189, 127
      %s192 = scalar_select %p191, %s189, 127
      %p193 = scmp.lt.s32.totalorder %s190, 1
      %s194 = scalar_select %p193, %s190, 1
      %s195 = smul.addr %s192, 2
      %s196 = sadd.s32 %s194, %s195
      %s197 = smul.addr %s196, 8
      %s198 = scalar_lea.vmem %s0, %s197
      %p199 = pneg %p50
      %p200 = pneg %p47
      %p201 = pneg %p71
      %p202 = pneg %p68
      %p203 = pneg %p92
      %p204 = pneg %p89
      %p205 = pneg %p113
      %p206 = pneg %p110
      %p207 = pneg %p139
      %p208 = pneg %p136
      %s209 = smul.u32 64, %s19
      %p210 = scmp.lt.s32.totalorder %s209, 127
      %s211 = scalar_select %p210, %s209, 127
      %s212 = smul.addr %s211, 8
      %s213 = scalar_lea.vmem %s4, %s212
      %s214 = smul.u32 64, %s19
      %s215 = smul.u32 2, %s20
      %p216 = scmp.lt.s32.totalorder %s214, 127
      %s217 = scalar_select %p216, %s214, 127
      %p218 = scmp.lt.s32.totalorder %s215, 1
      %s219 = scalar_select %p218, %s215, 1
      %s220 = smul.addr %s217, 2
      %s221 = sadd.s32 %s219, %s220
      %s222 = smul.addr %s221, 8
      %s223 = scalar_lea.vmem %s0, %s222
      %s224 = smul.u32 64, %s19
      %s225 = smul.u32 2, %s20
      %s226 = smul.u32 64, %s19
      %p227 = scmp.lt.s32.totalorder %s226, 127
      %s228 = scalar_select %p227, %s226, 127
      %s229 = smul.addr %s228, 8
      %s230 = scalar_lea.vmem %s4, %s229
      %s231 = smul.u32 64, %s19
      %v232 = vld [vmem:[%s223] sm:$0xff]
      %v233 = vld [vmem:[%s223 + $0x8] sm:$0xff]
      %v234 = vld [vmem:[%s223 + $0x10] sm:$0xff]
      %v235 = vld [vmem:[%s223 + $0x18] sm:$0xff]
      %v236 = vld [vmem:[%s223 + $0x20] sm:$0xff]
      %v237 = vld [vmem:[%s223 + $0x28] sm:$0xff]
      %v238 = vld [vmem:[%s223 + $0x30] sm:$0xff]
      %v239 = vld [vmem:[%s223 + $0x38] sm:$0xff]
      %v240 = vld [vmem:[%s223 + $0x40] sm:$0xff]
      %v241 = vld [vmem:[%s223 + $0x48] sm:$0xff]
      %v242 = vld [vmem:[%s223 + $0x50] sm:$0xff]
      %v243 = vld [vmem:[%s223 + $0x58] sm:$0xff]
      %v244 = vld [vmem:[%s223 + $0x60] sm:$0xff]
      %v245 = vld [vmem:[%s223 + $0x68] sm:$0xff]
      %v246 = vld [vmem:[%s223 + $0x70] sm:$0xff]
      %v247 = vld [vmem:[%s223 + $0x78] sm:$0xff]
      %v248 = vld [vmem:[%s223 + $0x80] sm:$0xff]
      %v249 = vld [vmem:[%s223 + $0x88] sm:$0xff]
      %v250 = vld [vmem:[%s223 + $0x90] sm:$0xff]
      %v251 = vld [vmem:[%s223 + $0x98] sm:$0xff]
      %v252 = vld [vmem:[%s223 + $0xa0] sm:$0xff]
      %v253 = vld [vmem:[%s223 + $0xa8] sm:$0xff]
      %v254 = vld [vmem:[%s223 + $0xb0] sm:$0xff]
      %v255 = vld [vmem:[%s223 + $0xb8] sm:$0xff]
      %v256 = vld [vmem:[%s223 + $0xc0] sm:$0xff]
      %v257 = vld [vmem:[%s223 + $0xc8] sm:$0xff]
      %v258 = vld [vmem:[%s223 + $0xd0] sm:$0xff]
      %v259 = vld [vmem:[%s223 + $0xd8] sm:$0xff]
      %v260 = vld [vmem:[%s223 + $0xe0] sm:$0xff]
      %v261 = vld [vmem:[%s223 + $0xe8] sm:$0xff]
      %v262 = vld [vmem:[%s223 + $0xf0] sm:$0xff]
      %v263 = vld [vmem:[%s223 + $0xf8] sm:$0xff]
      %v264 = vld [vmem:[%s223 + $0x100] sm:$0xff]
      %v265 = vld [vmem:[%s223 + $0x108] sm:$0xff]
      %v266 = vld [vmem:[%s223 + $0x110] sm:$0xff]
      %v267 = vld [vmem:[%s223 + $0x118] sm:$0xff]
      %v268 = vld [vmem:[%s223 + $0x120] sm:$0xff]
      %v269 = vld [vmem:[%s223 + $0x128] sm:$0xff]
      %v270 = vld [vmem:[%s223 + $0x130] sm:$0xff]
      %v271 = vld [vmem:[%s223 + $0x138] sm:$0xff]
      %v272 = vld [vmem:[%s223 + $0x140] sm:$0xff]
      %v273 = vld [vmem:[%s223 + $0x148] sm:$0xff]
      %v274 = vld [vmem:[%s223 + $0x150] sm:$0xff]
      %v275 = vld [vmem:[%s223 + $0x158] sm:$0xff]
      %v276 = vld [vmem:[%s223 + $0x160] sm:$0xff]
      %v277 = vld [vmem:[%s223 + $0x168] sm:$0xff]
      %v278 = vld [vmem:[%s223 + $0x170] sm:$0xff]
      %v279 = vld [vmem:[%s223 + $0x178] sm:$0xff]
      %v280 = vld [vmem:[%s223 + $0x180] sm:$0xff]
      %v281 = vld [vmem:[%s223 + $0x188] sm:$0xff]
      %v282 = vld [vmem:[%s223 + $0x190] sm:$0xff]
      %v283 = vld [vmem:[%s223 + $0x198] sm:$0xff]
      %v284 = vld [vmem:[%s223 + $0x1a0] sm:$0xff]
      %v285 = vld [vmem:[%s223 + $0x1a8] sm:$0xff]
      %v286 = vld [vmem:[%s223 + $0x1b0] sm:$0xff]
      %v287 = vld [vmem:[%s223 + $0x1b8] sm:$0xff]
      %v288 = vld [vmem:[%s223 + $0x1c0] sm:$0xff]
      %v289 = vld [vmem:[%s223 + $0x1c8] sm:$0xff]
      %v290 = vld [vmem:[%s223 + $0x1d0] sm:$0xff]
      %v291 = vld [vmem:[%s223 + $0x1d8] sm:$0xff]
      %v292 = vld [vmem:[%s223 + $0x1e0] sm:$0xff]
      %v293 = vld [vmem:[%s223 + $0x1e8] sm:$0xff]
      %v294 = vld [vmem:[%s223 + $0x1f0] sm:$0xff]
      %v295 = vld [vmem:[%s223 + $0x1f8] sm:$0xff]
      %v296 = vld [vmem:[%s223 + $0x200] sm:$0xff]
      %v297 = vld [vmem:[%s223 + $0x208] sm:$0xff]
      %v298 = vld [vmem:[%s223 + $0x210] sm:$0xff]
      %v299 = vld [vmem:[%s223 + $0x218] sm:$0xff]
      %v300 = vld [vmem:[%s223 + $0x220] sm:$0xff]
      %v301 = vld [vmem:[%s223 + $0x228] sm:$0xff]
      %v302 = vld [vmem:[%s223 + $0x230] sm:$0xff]
      %v303 = vld [vmem:[%s223 + $0x238] sm:$0xff]
      %v304 = vld [vmem:[%s223 + $0x240] sm:$0xff]
      %v305 = vld [vmem:[%s223 + $0x248] sm:$0xff]
      %v306 = vld [vmem:[%s223 + $0x250] sm:$0xff]
      %v307 = vld [vmem:[%s223 + $0x258] sm:$0xff]
      %v308 = vld [vmem:[%s223 + $0x260] sm:$0xff]
      %v309 = vld [vmem:[%s223 + $0x268] sm:$0xff]
      %v310 = vld [vmem:[%s223 + $0x270] sm:$0xff]
      %v311 = vld [vmem:[%s223 + $0x278] sm:$0xff]
      %v312 = vld [vmem:[%s223 + $0x280] sm:$0xff]
      %v313 = vld [vmem:[%s223 + $0x288] sm:$0xff]
      %v314 = vld [vmem:[%s223 + $0x290] sm:$0xff]
      %v315 = vld [vmem:[%s223 + $0x298] sm:$0xff]
      %v316 = vld [vmem:[%s223 + $0x2a0] sm:$0xff]
      %v317 = vld [vmem:[%s223 + $0x2a8] sm:$0xff]
      %v318 = vld [vmem:[%s223 + $0x2b0] sm:$0xff]
      %v319 = vld [vmem:[%s223 + $0x2b8] sm:$0xff]
      %v320 = vld [vmem:[%s223 + $0x2c0] sm:$0xff]
      %v321 = vld [vmem:[%s223 + $0x2c8] sm:$0xff]
      %v322 = vld [vmem:[%s223 + $0x2d0] sm:$0xff]
      %v323 = vld [vmem:[%s223 + $0x2d8] sm:$0xff]
      %v324 = vld [vmem:[%s223 + $0x2e0] sm:$0xff]
      %v325 = vld [vmem:[%s223 + $0x2e8] sm:$0xff]
      %v326 = vld [vmem:[%s223 + $0x2f0] sm:$0xff]
      %v327 = vld [vmem:[%s223 + $0x2f8] sm:$0xff]
      %v328 = vld [vmem:[%s223 + $0x300] sm:$0xff]
      %v329 = vld [vmem:[%s223 + $0x308] sm:$0xff]
      %v330 = vld [vmem:[%s223 + $0x310] sm:$0xff]
      %v331 = vld [vmem:[%s223 + $0x318] sm:$0xff]
      %v332 = vld [vmem:[%s223 + $0x320] sm:$0xff]
      %v333 = vld [vmem:[%s223 + $0x328] sm:$0xff]
      %v334 = vld [vmem:[%s223 + $0x330] sm:$0xff]
      %v335 = vld [vmem:[%s223 + $0x338] sm:$0xff]
      %v336 = vld [vmem:[%s223 + $0x340] sm:$0xff]
      %v337 = vld [vmem:[%s223 + $0x348] sm:$0xff]
      %v338 = vld [vmem:[%s223 + $0x350] sm:$0xff]
      %v339 = vld [vmem:[%s223 + $0x358] sm:$0xff]
      %v340 = vld [vmem:[%s223 + $0x360] sm:$0xff]
      %v341 = vld [vmem:[%s223 + $0x368] sm:$0xff]
      %v342 = vld [vmem:[%s223 + $0x370] sm:$0xff]
      %v343 = vld [vmem:[%s223 + $0x378] sm:$0xff]
      %v344 = vld [vmem:[%s223 + $0x380] sm:$0xff]
      %v345 = vld [vmem:[%s223 + $0x388] sm:$0xff]
      %v346 = vld [vmem:[%s223 + $0x390] sm:$0xff]
      %v347 = vld [vmem:[%s223 + $0x398] sm:$0xff]
      %v348 = vld [vmem:[%s223 + $0x3a0] sm:$0xff]
      %v349 = vld [vmem:[%s223 + $0x3a8] sm:$0xff]
      %v350 = vld [vmem:[%s223 + $0x3b0] sm:$0xff]
      %v351 = vld [vmem:[%s223 + $0x3b8] sm:$0xff]
      %v352 = vld [vmem:[%s223 + $0x3c0] sm:$0xff]
      %v353 = vld [vmem:[%s223 + $0x3c8] sm:$0xff]
      %v354 = vld [vmem:[%s223 + $0x3d0] sm:$0xff]
      %v355 = vld [vmem:[%s223 + $0x3d8] sm:$0xff]
      %v356 = vld [vmem:[%s223 + $0x3e0] sm:$0xff]
      %v357 = vld [vmem:[%s223 + $0x3e8] sm:$0xff]
      %v358 = vld [vmem:[%s223 + $0x3f0] sm:$0xff]
      %v359 = vld [vmem:[%s223 + $0x3f8] sm:$0xff]
      %v360 = vld [vmem:[%s1] sm:$0xff]
      %v361 = vld [vmem:[%s1 + $0x8] sm:$0xff]
      %v362 = vld [vmem:[%s1 + $0x10] sm:$0xff]
      %v363 = vld [vmem:[%s1 + $0x18] sm:$0xff]
      %v364 = vld [vmem:[%s1 + $0x20] sm:$0xff]
      %v365 = vld [vmem:[%s1 + $0x28] sm:$0xff]
      %v366 = vld [vmem:[%s1 + $0x30] sm:$0xff]
      %v367 = vld [vmem:[%s1 + $0x38] sm:$0xff]
      %v368 = vld [vmem:[%s1 + $0x40] sm:$0xff]
      %v369 = vld [vmem:[%s1 + $0x48] sm:$0xff]
      %v370 = vld [vmem:[%s1 + $0x50] sm:$0xff]
      %v371 = vld [vmem:[%s1 + $0x58] sm:$0xff]
      %v372 = vld [vmem:[%s1 + $0x60] sm:$0xff]
      %v373 = vld [vmem:[%s1 + $0x68] sm:$0xff]
      %v374 = vld [vmem:[%s1 + $0x70] sm:$0xff]
      %v375 = vld [vmem:[%s1 + $0x78] sm:$0xff]
      %v376 = vld [vmem:[%s1 + $0x80] sm:$0xff]
      %v377 = vld [vmem:[%s1 + $0x88] sm:$0xff]
      %v378 = vld [vmem:[%s1 + $0x90] sm:$0xff]
      %v379 = vld [vmem:[%s1 + $0x98] sm:$0xff]
      %v380 = vld [vmem:[%s1 + $0xa0] sm:$0xff]
      %v381 = vld [vmem:[%s1 + $0xa8] sm:$0xff]
      %v382 = vld [vmem:[%s1 + $0xb0] sm:$0xff]
      %v383 = vld [vmem:[%s1 + $0xb8] sm:$0xff]
      %v384 = vld [vmem:[%s1 + $0xc0] sm:$0xff]
      %v385 = vld [vmem:[%s1 + $0xc8] sm:$0xff]
      %v386 = vld [vmem:[%s1 + $0xd0] sm:$0xff]
      %vm387 = vcmask 719872
      %v389 = vsel %vm387, %v233, 0
      %v392 = vsel %vm387, %v235, 0
      %v395 = vsel %vm387, %v237, 0
      %v398 = vsel %vm387, %v239, 0
      %v401 = vsel %vm387, %v241, 0
      %v404 = vsel %vm387, %v243, 0
      %v407 = vsel %vm387, %v245, 0
      %v410 = vsel %vm387, %v247, 0
      %v413 = vsel %vm387, %v249, 0
      %v416 = vsel %vm387, %v251, 0
      %v419 = vsel %vm387, %v253, 0
      %v422 = vsel %vm387, %v255, 0
      %v425 = vsel %vm387, %v257, 0
      %v428 = vsel %vm387, %v259, 0
      %v431 = vsel %vm387, %v261, 0
      %v434 = vsel %vm387, %v263, 0
      %v437 = vsel %vm387, %v265, 0
      %v440 = vsel %vm387, %v267, 0
      %v443 = vsel %vm387, %v269, 0
      %v446 = vsel %vm387, %v271, 0
      %v449 = vsel %vm387, %v273, 0
      %v452 = vsel %vm387, %v275, 0
      %v455 = vsel %vm387, %v277, 0
      %v458 = vsel %vm387, %v279, 0
      %v461 = vsel %vm387, %v281, 0
      %v464 = vsel %vm387, %v283, 0
      %v467 = vsel %vm387, %v285, 0
      %v470 = vsel %vm387, %v287, 0
      %v473 = vsel %vm387, %v289, 0
      %v476 = vsel %vm387, %v291, 0
      %v479 = vsel %vm387, %v293, 0
      %v482 = vsel %vm387, %v295, 0
      %v485 = vsel %vm387, %v297, 0
      %v488 = vsel %vm387, %v299, 0
      %v491 = vsel %vm387, %v301, 0
      %v494 = vsel %vm387, %v303, 0
      %v497 = vsel %vm387, %v305, 0
      %v500 = vsel %vm387, %v307, 0
      %v503 = vsel %vm387, %v309, 0
      %v506 = vsel %vm387, %v311, 0
      %v509 = vsel %vm387, %v313, 0
      %v512 = vsel %vm387, %v315, 0
      %v515 = vsel %vm387, %v317, 0
      %v518 = vsel %vm387, %v319, 0
      %v521 = vsel %vm387, %v321, 0
      %v524 = vsel %vm387, %v323, 0
      %v527 = vsel %vm387, %v325, 0
      %v530 = vsel %vm387, %v327, 0
      %v533 = vsel %vm387, %v329, 0
      %v536 = vsel %vm387, %v331, 0
      %v539 = vsel %vm387, %v333, 0
      %v542 = vsel %vm387, %v335, 0
      %v545 = vsel %vm387, %v337, 0
      %v548 = vsel %vm387, %v339, 0
      %v551 = vsel %vm387, %v341, 0
      %v554 = vsel %vm387, %v343, 0
      %v557 = vsel %vm387, %v345, 0
      %v560 = vsel %vm387, %v347, 0
      %v563 = vsel %vm387, %v349, 0
      %v566 = vsel %vm387, %v351, 0
      %v569 = vsel %vm387, %v353, 0
      %v572 = vsel %vm387, %v355, 0
      %v575 = vsel %vm387, %v357, 0
      %v578 = vsel %vm387, %v359, 0
      %580 = vmatpush.msra.mxu0 %v375
      %581 = vmatpush.msra.mxu0 %v374
      %582 = vmatpush.msra.mxu0 %v373
      %583 = vmatpush.msra.mxu0 %v372
      %584 = vmatpush.msra.mxu0 %v371
      %585 = vmatpush.msra.mxu0 %v370
      %586 = vmatpush.msra.mxu0 %v369
      %587 = vmatpush.msra.mxu0 %v368
      %588 = vmatpush.msra.mxu0 %v367
      %589 = vmatpush.msra.mxu0 %v366
      %590 = vmatpush.msra.mxu0 %v365
      %591 = vmatpush.msra.mxu0 %v364
      %592 = vmatpush.msra.mxu0 %v363
      %593 = vmatpush.msra.mxu0 %v362
      %594 = vmatpush.msra.mxu0 %v361
      %595 = vmatpush.msra.mxu0 %v360
      %596 = vmatmul.f32.gmra.mxu0 %v232
      %v597 = vpop.f32.mrf.mxu0
      %v598 = vadd.f32 0.0, %v597
      %599 = vmatmul.f32.gmra.mxu0 %v234
      %v600 = vpop.f32.mrf.mxu0
      %v601 = vadd.f32 0.0, %v600
      %602 = vmatmul.f32.gmra.mxu0 %v236
      %v603 = vpop.f32.mrf.mxu0
      %v604 = vadd.f32 0.0, %v603
      %605 = vmatmul.f32.gmra.mxu0 %v238
      %v606 = vpop.f32.mrf.mxu0
      %v607 = vadd.f32 0.0, %v606
      %608 = vmatmul.f32.gmra.mxu0 %v240
      %v609 = vpop.f32.mrf.mxu0
      %v610 = vadd.f32 0.0, %v609
      %611 = vmatmul.f32.gmra.mxu0 %v242
      %v612 = vpop.f32.mrf.mxu0
      %v613 = vadd.f32 0.0, %v612
      %614 = vmatmul.f32.gmra.mxu0 %v244
      %v615 = vpop.f32.mrf.mxu0
      %v616 = vadd.f32 0.0, %v615
      %617 = vmatmul.f32.gmra.mxu0 %v246
      %v618 = vpop.f32.mrf.mxu0
      %v619 = vadd.f32 0.0, %v618
      %620 = vmatmul.f32.gmra.mxu0 %v248
      %v621 = vpop.f32.mrf.mxu0
      %v622 = vadd.f32 0.0, %v621
      %623 = vmatmul.f32.gmra.mxu0 %v250
      %v624 = vpop.f32.mrf.mxu0
      %v625 = vadd.f32 0.0, %v624
      %626 = vmatmul.f32.gmra.mxu0 %v252
      %v627 = vpop.f32.mrf.mxu0
      %v628 = vadd.f32 0.0, %v627
      %629 = vmatmul.f32.gmra.mxu0 %v254
      %v630 = vpop.f32.mrf.mxu0
      %v631 = vadd.f32 0.0, %v630
      %632 = vmatmul.f32.gmra.mxu0 %v256
      %v633 = vpop.f32.mrf.mxu0
      %v634 = vadd.f32 0.0, %v633
      %635 = vmatmul.f32.gmra.mxu0 %v258
      %v636 = vpop.f32.mrf.mxu0
      %v637 = vadd.f32 0.0, %v636
      %638 = vmatmul.f32.gmra.mxu0 %v260
      %v639 = vpop.f32.mrf.mxu0
      %v640 = vadd.f32 0.0, %v639
      %641 = vmatmul.f32.gmra.mxu0 %v262
      %v642 = vpop.f32.mrf.mxu0
      %v643 = vadd.f32 0.0, %v642
      %644 = vmatmul.f32.gmra.mxu0 %v264
      %v645 = vpop.f32.mrf.mxu0
      %v646 = vadd.f32 0.0, %v645
      %647 = vmatmul.f32.gmra.mxu0 %v266
      %v648 = vpop.f32.mrf.mxu0
      %v649 = vadd.f32 0.0, %v648
      %650 = vmatmul.f32.gmra.mxu0 %v268
      %v651 = vpop.f32.mrf.mxu0
      %v652 = vadd.f32 0.0, %v651
      %653 = vmatmul.f32.gmra.mxu0 %v270
      %v654 = vpop.f32.mrf.mxu0
      %v655 = vadd.f32 0.0, %v654
      %656 = vmatmul.f32.gmra.mxu0 %v272
      %v657 = vpop.f32.mrf.mxu0
      %v658 = vadd.f32 0.0, %v657
      %659 = vmatmul.f32.gmra.mxu0 %v274
      %v660 = vpop.f32.mrf.mxu0
      %v661 = vadd.f32 0.0, %v660
      %662 = vmatmul.f32.gmra.mxu0 %v276
      %v663 = vpop.f32.mrf.mxu0
      %v664 = vadd.f32 0.0, %v663
      %665 = vmatmul.f32.gmra.mxu0 %v278
      %v666 = vpop.f32.mrf.mxu0
      %v667 = vadd.f32 0.0, %v666
      %668 = vmatmul.f32.gmra.mxu0 %v280
      %v669 = vpop.f32.mrf.mxu0
      %v670 = vadd.f32 0.0, %v669
      %671 = vmatmul.f32.gmra.mxu0 %v282
      %v672 = vpop.f32.mrf.mxu0
      %v673 = vadd.f32 0.0, %v672
      %674 = vmatmul.f32.gmra.mxu0 %v284
      %v675 = vpop.f32.mrf.mxu0
      %v676 = vadd.f32 0.0, %v675
      %677 = vmatmul.f32.gmra.mxu0 %v286
      %v678 = vpop.f32.mrf.mxu0
      %v679 = vadd.f32 0.0, %v678
      %680 = vmatmul.f32.gmra.mxu0 %v288
      %v681 = vpop.f32.mrf.mxu0
      %v682 = vadd.f32 0.0, %v681
      %683 = vmatmul.f32.gmra.mxu0 %v290
      %v684 = vpop.f32.mrf.mxu0
      %v685 = vadd.f32 0.0, %v684
      %686 = vmatmul.f32.gmra.mxu0 %v292
      %v687 = vpop.f32.mrf.mxu0
      %v688 = vadd.f32 0.0, %v687
      %689 = vmatmul.f32.gmra.mxu0 %v294
      %v690 = vpop.f32.mrf.mxu0
      %v691 = vadd.f32 0.0, %v690
      %692 = vmatmul.f32.gmra.mxu0 %v296
      %v693 = vpop.f32.mrf.mxu0
      %v694 = vadd.f32 0.0, %v693
      %695 = vmatmul.f32.gmra.mxu0 %v298
      %v696 = vpop.f32.mrf.mxu0
      %v697 = vadd.f32 0.0, %v696
      %698 = vmatmul.f32.gmra.mxu0 %v300
      %v699 = vpop.f32.mrf.mxu0
      %v700 = vadd.f32 0.0, %v699
      %701 = vmatmul.f32.gmra.mxu0 %v302
      %v702 = vpop.f32.mrf.mxu0
      %v703 = vadd.f32 0.0, %v702
      %704 = vmatmul.f32.gmra.mxu0 %v304
      %v705 = vpop.f32.mrf.mxu0
      %v706 = vadd.f32 0.0, %v705
      %707 = vmatmul.f32.gmra.mxu0 %v306
      %v708 = vpop.f32.mrf.mxu0
      %v709 = vadd.f32 0.0, %v708
      %710 = vmatmul.f32.gmra.mxu0 %v308
      %v711 = vpop.f32.mrf.mxu0
      %v712 = vadd.f32 0.0, %v711
      %713 = vmatmul.f32.gmra.mxu0 %v310
      %v714 = vpop.f32.mrf.mxu0
      %v715 = vadd.f32 0.0, %v714
      %716 = vmatmul.f32.gmra.mxu0 %v312
      %v717 = vpop.f32.mrf.mxu0
      %v718 = vadd.f32 0.0, %v717
      %719 = vmatmul.f32.gmra.mxu0 %v314
      %v720 = vpop.f32.mrf.mxu0
      %v721 = vadd.f32 0.0, %v720
      %722 = vmatmul.f32.gmra.mxu0 %v316
      %v723 = vpop.f32.mrf.mxu0
      %v724 = vadd.f32 0.0, %v723
      %725 = vmatmul.f32.gmra.mxu0 %v318
      %v726 = vpop.f32.mrf.mxu0
      %v727 = vadd.f32 0.0, %v726
      %728 = vmatmul.f32.gmra.mxu0 %v320
      %v729 = vpop.f32.mrf.mxu0
      %v730 = vadd.f32 0.0, %v729
      %731 = vmatmul.f32.gmra.mxu0 %v322
      %v732 = vpop.f32.mrf.mxu0
      %v733 = vadd.f32 0.0, %v732
      %734 = vmatmul.f32.gmra.mxu0 %v324
      %v735 = vpop.f32.mrf.mxu0
      %v736 = vadd.f32 0.0, %v735
      %737 = vmatmul.f32.gmra.mxu0 %v326
      %v738 = vpop.f32.mrf.mxu0
      %v739 = vadd.f32 0.0, %v738
      %740 = vmatmul.f32.gmra.mxu0 %v328
      %v741 = vpop.f32.mrf.mxu0
      %v742 = vadd.f32 0.0, %v741
      %743 = vmatmul.f32.gmra.mxu0 %v330
      %v744 = vpop.f32.mrf.mxu0
      %v745 = vadd.f32 0.0, %v744
      %746 = vmatmul.f32.gmra.mxu0 %v332
      %v747 = vpop.f32.mrf.mxu0
      %v748 = vadd.f32 0.0, %v747
      %749 = vmatmul.f32.gmra.mxu0 %v334
      %v750 = vpop.f32.mrf.mxu0
      %v751 = vadd.f32 0.0, %v750
      %752 = vmatmul.f32.gmra.mxu0 %v336
      %v753 = vpop.f32.mrf.mxu0
      %v754 = vadd.f32 0.0, %v753
      %755 = vmatmul.f32.gmra.mxu0 %v338
      %v756 = vpop.f32.mrf.mxu0
      %v757 = vadd.f32 0.0, %v756
      %758 = vmatmul.f32.gmra.mxu0 %v340
      %v759 = vpop.f32.mrf.mxu0
      %v760 = vadd.f32 0.0, %v759
      %761 = vmatmul.f32.gmra.mxu0 %v342
      %v762 = vpop.f32.mrf.mxu0
      %v763 = vadd.f32 0.0, %v762
      %764 = vmatmul.f32.gmra.mxu0 %v344
      %v765 = vpop.f32.mrf.mxu0
      %v766 = vadd.f32 0.0, %v765
      %767 = vmatmul.f32.gmra.mxu0 %v346
      %v768 = vpop.f32.mrf.mxu0
      %v769 = vadd.f32 0.0, %v768
      %770 = vmatmul.f32.gmra.mxu0 %v348
      %v771 = vpop.f32.mrf.mxu0
      %v772 = vadd.f32 0.0, %v771
      %773 = vmatmul.f32.gmra.mxu0 %v350
      %v774 = vpop.f32.mrf.mxu0
      %v775 = vadd.f32 0.0, %v774
      %776 = vmatmul.f32.gmra.mxu0 %v352
      %v777 = vpop.f32.mrf.mxu0
      %v778 = vadd.f32 0.0, %v777
      %779 = vmatmul.f32.gmra.mxu0 %v354
      %v780 = vpop.f32.mrf.mxu0
      %v781 = vadd.f32 0.0, %v780
      %782 = vmatmul.f32.gmra.mxu0 %v356
      %v783 = vpop.f32.mrf.mxu0
      %v784 = vadd.f32 0.0, %v783
      %785 = vmatmul.f32.gmra.mxu0 %v358
      %v786 = vpop.f32.mrf.mxu0
      %v787 = vadd.f32 0.0, %v786
      %788 = vdwg.mxu0
      %789 = vmatpush.msra.mxu0 0.0
      %790 = vmatpush.msra.mxu0 0.0
      %791 = vmatpush.msra.mxu0 0.0
      %792 = vmatpush.msra.mxu0 0.0
      %793 = vmatpush.msra.mxu0 0.0
      %794 = vmatpush.msra.mxu0 %v386
      %795 = vmatpush.msra.mxu0 %v385
      %796 = vmatpush.msra.mxu0 %v384
      %797 = vmatpush.msra.mxu0 %v383
      %798 = vmatpush.msra.mxu0 %v382
      %799 = vmatpush.msra.mxu0 %v381
      %800 = vmatpush.msra.mxu0 %v380
      %801 = vmatpush.msra.mxu0 %v379
      %802 = vmatpush.msra.mxu0 %v378
      %803 = vmatpush.msra.mxu0 %v377
      %804 = vmatpush.msra.mxu0 %v376
      %805 = vmatmul.f32.gmra.mxu0 %v389
      %v806 = vpop.f32.mrf.mxu0
      %v807 = vadd.f32 %v598, %v806
      %808 = vmatmul.f32.gmra.mxu0 %v392
      %v809 = vpop.f32.mrf.mxu0
      %v810 = vadd.f32 %v601, %v809
      %811 = vmatmul.f32.gmra.mxu0 %v395
      %v812 = vpop.f32.mrf.mxu0
      %v813 = vadd.f32 %v604, %v812
      %814 = vmatmul.f32.gmra.mxu0 %v398
      %v815 = vpop.f32.mrf.mxu0
      %v816 = vadd.f32 %v607, %v815
      %817 = vmatmul.f32.gmra.mxu0 %v401
      %v818 = vpop.f32.mrf.mxu0
      %v819 = vadd.f32 %v610, %v818
      %820 = vmatmul.f32.gmra.mxu0 %v404
      %v821 = vpop.f32.mrf.mxu0
      %v822 = vadd.f32 %v613, %v821
      %823 = vmatmul.f32.gmra.mxu0 %v407
      %v824 = vpop.f32.mrf.mxu0
      %v825 = vadd.f32 %v616, %v824
      %826 = vmatmul.f32.gmra.mxu0 %v410
      %v827 = vpop.f32.mrf.mxu0
      %v828 = vadd.f32 %v619, %v827
      %829 = vmatmul.f32.gmra.mxu0 %v413
      %v830 = vpop.f32.mrf.mxu0
      %v831 = vadd.f32 %v622, %v830
      %832 = vmatmul.f32.gmra.mxu0 %v416
      %v833 = vpop.f32.mrf.mxu0
      %v834 = vadd.f32 %v625, %v833
      %835 = vmatmul.f32.gmra.mxu0 %v419
      %v836 = vpop.f32.mrf.mxu0
      %v837 = vadd.f32 %v628, %v836
      %838 = vmatmul.f32.gmra.mxu0 %v422
      %v839 = vpop.f32.mrf.mxu0
      %v840 = vadd.f32 %v631, %v839
      %841 = vmatmul.f32.gmra.mxu0 %v425
      %v842 = vpop.f32.mrf.mxu0
      %v843 = vadd.f32 %v634, %v842
      %844 = vmatmul.f32.gmra.mxu0 %v428
      %v845 = vpop.f32.mrf.mxu0
      %v846 = vadd.f32 %v637, %v845
      %847 = vmatmul.f32.gmra.mxu0 %v431
      %v848 = vpop.f32.mrf.mxu0
      %v849 = vadd.f32 %v640, %v848
      %850 = vmatmul.f32.gmra.mxu0 %v434
      %v851 = vpop.f32.mrf.mxu0
      %v852 = vadd.f32 %v643, %v851
      %853 = vmatmul.f32.gmra.mxu0 %v437
      %v854 = vpop.f32.mrf.mxu0
      %v855 = vadd.f32 %v646, %v854
      %856 = vmatmul.f32.gmra.mxu0 %v440
      %v857 = vpop.f32.mrf.mxu0
      %v858 = vadd.f32 %v649, %v857
      %859 = vmatmul.f32.gmra.mxu0 %v443
      %v860 = vpop.f32.mrf.mxu0
      %v861 = vadd.f32 %v652, %v860
      %862 = vmatmul.f32.gmra.mxu0 %v446
      %v863 = vpop.f32.mrf.mxu0
      %v864 = vadd.f32 %v655, %v863
      %865 = vmatmul.f32.gmra.mxu0 %v449
      %v866 = vpop.f32.mrf.mxu0
      %v867 = vadd.f32 %v658, %v866
      %868 = vmatmul.f32.gmra.mxu0 %v452
      %v869 = vpop.f32.mrf.mxu0
      %v870 = vadd.f32 %v661, %v869
      %871 = vmatmul.f32.gmra.mxu0 %v455
      %v872 = vpop.f32.mrf.mxu0
      %v873 = vadd.f32 %v664, %v872
      %874 = vmatmul.f32.gmra.mxu0 %v458
      %v875 = vpop.f32.mrf.mxu0
      %v876 = vadd.f32 %v667, %v875
      %877 = vmatmul.f32.gmra.mxu0 %v461
      %v878 = vpop.f32.mrf.mxu0
      %v879 = vadd.f32 %v670, %v878
      %880 = vmatmul.f32.gmra.mxu0 %v464
      %v881 = vpop.f32.mrf.mxu0
      %v882 = vadd.f32 %v673, %v881
      %883 = vmatmul.f32.gmra.mxu0 %v467
      %v884 = vpop.f32.mrf.mxu0
      %v885 = vadd.f32 %v676, %v884
      %886 = vmatmul.f32.gmra.mxu0 %v470
      %v887 = vpop.f32.mrf.mxu0
      %v888 = vadd.f32 %v679, %v887
      %889 = vmatmul.f32.gmra.mxu0 %v473
      %v890 = vpop.f32.mrf.mxu0
      %v891 = vadd.f32 %v682, %v890
      %892 = vmatmul.f32.gmra.mxu0 %v476
      %v893 = vpop.f32.mrf.mxu0
      %v894 = vadd.f32 %v685, %v893
      %895 = vmatmul.f32.gmra.mxu0 %v479
      %v896 = vpop.f32.mrf.mxu0
      %v897 = vadd.f32 %v688, %v896
      %898 = vmatmul.f32.gmra.mxu0 %v482
      %v899 = vpop.f32.mrf.mxu0
      %v900 = vadd.f32 %v691, %v899
      %901 = vmatmul.f32.gmra.mxu0 %v485
      %v902 = vpop.f32.mrf.mxu0
      %v903 = vadd.f32 %v694, %v902
      %904 = vmatmul.f32.gmra.mxu0 %v488
      %v905 = vpop.f32.mrf.mxu0
      %v906 = vadd.f32 %v697, %v905
      %907 = vmatmul.f32.gmra.mxu0 %v491
      %v908 = vpop.f32.mrf.mxu0
      %v909 = vadd.f32 %v700, %v908
      %910 = vmatmul.f32.gmra.mxu0 %v494
      %v911 = vpop.f32.mrf.mxu0
      %v912 = vadd.f32 %v703, %v911
      %913 = vmatmul.f32.gmra.mxu0 %v497
      %v914 = vpop.f32.mrf.mxu0
      %v915 = vadd.f32 %v706, %v914
      %916 = vmatmul.f32.gmra.mxu0 %v500
      %v917 = vpop.f32.mrf.mxu0
      %v918 = vadd.f32 %v709, %v917
      %919 = vmatmul.f32.gmra.mxu0 %v503
      %v920 = vpop.f32.mrf.mxu0
      %v921 = vadd.f32 %v712, %v920
      %922 = vmatmul.f32.gmra.mxu0 %v506
      %v923 = vpop.f32.mrf.mxu0
      %v924 = vadd.f32 %v715, %v923
      %925 = vmatmul.f32.gmra.mxu0 %v509
      %v926 = vpop.f32.mrf.mxu0
      %v927 = vadd.f32 %v718, %v926
      %928 = vmatmul.f32.gmra.mxu0 %v512
      %v929 = vpop.f32.mrf.mxu0
      %v930 = vadd.f32 %v721, %v929
      %931 = vmatmul.f32.gmra.mxu0 %v515
      %v932 = vpop.f32.mrf.mxu0
      %v933 = vadd.f32 %v724, %v932
      %934 = vmatmul.f32.gmra.mxu0 %v518
      %v935 = vpop.f32.mrf.mxu0
      %v936 = vadd.f32 %v727, %v935
      %937 = vmatmul.f32.gmra.mxu0 %v521
      %v938 = vpop.f32.mrf.mxu0
      %v939 = vadd.f32 %v730, %v938
      %940 = vmatmul.f32.gmra.mxu0 %v524
      %v941 = vpop.f32.mrf.mxu0
      %v942 = vadd.f32 %v733, %v941
      %943 = vmatmul.f32.gmra.mxu0 %v527
      %v944 = vpop.f32.mrf.mxu0
      %v945 = vadd.f32 %v736, %v944
      %946 = vmatmul.f32.gmra.mxu0 %v530
      %v947 = vpop.f32.mrf.mxu0
      %v948 = vadd.f32 %v739, %v947
      %949 = vmatmul.f32.gmra.mxu0 %v533
      %v950 = vpop.f32.mrf.mxu0
      %v951 = vadd.f32 %v742, %v950
      %952 = vmatmul.f32.gmra.mxu0 %v536
      %v953 = vpop.f32.mrf.mxu0
      %v954 = vadd.f32 %v745, %v953
      %955 = vmatmul.f32.gmra.mxu0 %v539
      %v956 = vpop.f32.mrf.mxu0
      %v957 = vadd.f32 %v748, %v956
      %958 = vmatmul.f32.gmra.mxu0 %v542
      %v959 = vpop.f32.mrf.mxu0
      %v960 = vadd.f32 %v751, %v959
      %961 = vmatmul.f32.gmra.mxu0 %v545
      %v962 = vpop.f32.mrf.mxu0
      %v963 = vadd.f32 %v754, %v962
      %964 = vmatmul.f32.gmra.mxu0 %v548
      %v965 = vpop.f32.mrf.mxu0
      %v966 = vadd.f32 %v757, %v965
      %967 = vmatmul.f32.gmra.mxu0 %v551
      %v968 = vpop.f32.mrf.mxu0
      %v969 = vadd.f32 %v760, %v968
      %970 = vmatmul.f32.gmra.mxu0 %v554
      %v971 = vpop.f32.mrf.mxu0
      %v972 = vadd.f32 %v763, %v971
      %973 = vmatmul.f32.gmra.mxu0 %v557
      %v974 = vpop.f32.mrf.mxu0
      %v975 = vadd.f32 %v766, %v974
      %976 = vmatmul.f32.gmra.mxu0 %v560
      %v977 = vpop.f32.mrf.mxu0
      %v978 = vadd.f32 %v769, %v977
      %979 = vmatmul.f32.gmra.mxu0 %v563
      %v980 = vpop.f32.mrf.mxu0
      %v981 = vadd.f32 %v772, %v980
      %982 = vmatmul.f32.gmra.mxu0 %v566
      %v983 = vpop.f32.mrf.mxu0
      %v984 = vadd.f32 %v775, %v983
      %985 = vmatmul.f32.gmra.mxu0 %v569
      %v986 = vpop.f32.mrf.mxu0
      %v987 = vadd.f32 %v778, %v986
      %988 = vmatmul.f32.gmra.mxu0 %v572
      %v989 = vpop.f32.mrf.mxu0
      %v990 = vadd.f32 %v781, %v989
      %991 = vmatmul.f32.gmra.mxu0 %v575
      %v992 = vpop.f32.mrf.mxu0
      %v993 = vadd.f32 %v784, %v992
      %994 = vmatmul.f32.gmra.mxu0 %v578
      %v995 = vpop.f32.mrf.mxu0
      %v996 = vadd.f32 %v787, %v995
      %997 = vdwg.mxu0
      %v998 = vld [vmem:[%s2] sm:$0x1]
      %v1000 = vperm.slane %v998, 0
      %v1002 = vmul.f32 %v807, %v1000
      %v1003 = vmul.f32 %v810, %v1000
      %v1004 = vmul.f32 %v813, %v1000
      %v1005 = vmul.f32 %v816, %v1000
      %v1006 = vmul.f32 %v819, %v1000
      %v1007 = vmul.f32 %v822, %v1000
      %v1008 = vmul.f32 %v825, %v1000
      %v1009 = vmul.f32 %v828, %v1000
      %v1010 = vmul.f32 %v831, %v1000
      %v1011 = vmul.f32 %v834, %v1000
      %v1012 = vmul.f32 %v837, %v1000
      %v1013 = vmul.f32 %v840, %v1000
      %v1014 = vmul.f32 %v843, %v1000
      %v1015 = vmul.f32 %v846, %v1000
      %v1016 = vmul.f32 %v849, %v1000
      %v1017 = vmul.f32 %v852, %v1000
      %v1018 = vmul.f32 %v855, %v1000
      %v1019 = vmul.f32 %v858, %v1000
      %v1020 = vmul.f32 %v861, %v1000
      %v1021 = vmul.f32 %v864, %v1000
      %v1022 = vmul.f32 %v867, %v1000
      %v1023 = vmul.f32 %v870, %v1000
      %v1024 = vmul.f32 %v873, %v1000
      %v1025 = vmul.f32 %v876, %v1000
      %v1026 = vmul.f32 %v879, %v1000
      %v1027 = vmul.f32 %v882, %v1000
      %v1028 = vmul.f32 %v885, %v1000
      %v1029 = vmul.f32 %v888, %v1000
      %v1030 = vmul.f32 %v891, %v1000
      %v1031 = vmul.f32 %v894, %v1000
      %v1032 = vmul.f32 %v897, %v1000
      %v1033 = vmul.f32 %v900, %v1000
      %v1034 = vmul.f32 %v903, %v1000
      %v1035 = vmul.f32 %v906, %v1000
      %v1036 = vmul.f32 %v909, %v1000
      %v1037 = vmul.f32 %v912, %v1000
      %v1038 = vmul.f32 %v915, %v1000
      %v1039 = vmul.f32 %v918, %v1000
      %v1040 = vmul.f32 %v921, %v1000
      %v1041 = vmul.f32 %v924, %v1000
      %v1042 = vmul.f32 %v927, %v1000
      %v1043 = vmul.f32 %v930, %v1000
      %v1044 = vmul.f32 %v933, %v1000
      %v1045 = vmul.f32 %v936, %v1000
      %v1046 = vmul.f32 %v939, %v1000
      %v1047 = vmul.f32 %v942, %v1000
      %v1048 = vmul.f32 %v945, %v1000
      %v1049 = vmul.f32 %v948, %v1000
      %v1050 = vmul.f32 %v951, %v1000
      %v1051 = vmul.f32 %v954, %v1000
      %v1052 = vmul.f32 %v957, %v1000
      %v1053 = vmul.f32 %v960, %v1000
      %v1054 = vmul.f32 %v963, %v1000
      %v1055 = vmul.f32 %v966, %v1000
      %v1056 = vmul.f32 %v969, %v1000
      %v1057 = vmul.f32 %v972, %v1000
      %v1058 = vmul.f32 %v975, %v1000
      %v1059 = vmul.f32 %v978, %v1000
      %v1060 = vmul.f32 %v981, %v1000
      %v1061 = vmul.f32 %v984, %v1000
      %v1062 = vmul.f32 %v987, %v1000
      %v1063 = vmul.f32 %v990, %v1000
      %v1064 = vmul.f32 %v993, %v1000
      %v1065 = vmul.f32 %v996, %v1000
      %v1066 = vld [vmem:[%s3] sm:$0x1]
      %v1068 = vperm.slane %v1066, 0
      %v1070 = vadd.f32 %v1002, %v1068
      %v1071 = vadd.f32 %v1003, %v1068
      %v1072 = vadd.f32 %v1004, %v1068
      %v1073 = vadd.f32 %v1005, %v1068
      %v1074 = vadd.f32 %v1006, %v1068
      %v1075 = vadd.f32 %v1007, %v1068
      %v1076 = vadd.f32 %v1008, %v1068
      %v1077 = vadd.f32 %v1009, %v1068
      %v1078 = vadd.f32 %v1010, %v1068
      %v1079 = vadd.f32 %v1011, %v1068
      %v1080 = vadd.f32 %v1012, %v1068
      %v1081 = vadd.f32 %v1013, %v1068
      %v1082 = vadd.f32 %v1014, %v1068
      %v1083 = vadd.f32 %v1015, %v1068
      %v1084 = vadd.f32 %v1016, %v1068
      %v1085 = vadd.f32 %v1017, %v1068
      %v1086 = vadd.f32 %v1018, %v1068
      %v1087 = vadd.f32 %v1019, %v1068
      %v1088 = vadd.f32 %v1020, %v1068
      %v1089 = vadd.f32 %v1021, %v1068
      %v1090 = vadd.f32 %v1022, %v1068
      %v1091 = vadd.f32 %v1023, %v1068
      %v1092 = vadd.f32 %v1024, %v1068
      %v1093 = vadd.f32 %v1025, %v1068
      %v1094 = vadd.f32 %v1026, %v1068
      %v1095 = vadd.f32 %v1027, %v1068
      %v1096 = vadd.f32 %v1028, %v1068
      %v1097 = vadd.f32 %v1029, %v1068
      %v1098 = vadd.f32 %v1030, %v1068
      %v1099 = vadd.f32 %v1031, %v1068
      %v1100 = vadd.f32 %v1032, %v1068
      %v1101 = vadd.f32 %v1033, %v1068
      %v1102 = vadd.f32 %v1034, %v1068
      %v1103 = vadd.f32 %v1035, %v1068
      %v1104 = vadd.f32 %v1036, %v1068
      %v1105 = vadd.f32 %v1037, %v1068
      %v1106 = vadd.f32 %v1038, %v1068
      %v1107 = vadd.f32 %v1039, %v1068
      %v1108 = vadd.f32 %v1040, %v1068
      %v1109 = vadd.f32 %v1041, %v1068
      %v1110 = vadd.f32 %v1042, %v1068
      %v1111 = vadd.f32 %v1043, %v1068
      %v1112 = vadd.f32 %v1044, %v1068
      %v1113 = vadd.f32 %v1045, %v1068
      %v1114 = vadd.f32 %v1046, %v1068
      %v1115 = vadd.f32 %v1047, %v1068
      %v1116 = vadd.f32 %v1048, %v1068
      %v1117 = vadd.f32 %v1049, %v1068
      %v1118 = vadd.f32 %v1050, %v1068
      %v1119 = vadd.f32 %v1051, %v1068
      %v1120 = vadd.f32 %v1052, %v1068
      %v1121 = vadd.f32 %v1053, %v1068
      %v1122 = vadd.f32 %v1054, %v1068
      %v1123 = vadd.f32 %v1055, %v1068
      %v1124 = vadd.f32 %v1056, %v1068
      %v1125 = vadd.f32 %v1057, %v1068
      %v1126 = vadd.f32 %v1058, %v1068
      %v1127 = vadd.f32 %v1059, %v1068
      %v1128 = vadd.f32 %v1060, %v1068
      %v1129 = vadd.f32 %v1061, %v1068
      %v1130 = vadd.f32 %v1062, %v1068
      %v1131 = vadd.f32 %v1063, %v1068
      %v1132 = vadd.f32 %v1064, %v1068
      %v1133 = vadd.f32 %v1065, %v1068
      %v1134 = vmax.f32 %v1070, 0.0
      %v1135 = vmax.f32 %v1071, 0.0
      %v1136 = vmax.f32 %v1072, 0.0
      %v1137 = vmax.f32 %v1073, 0.0
      %v1138 = vmax.f32 %v1074, 0.0
      %v1139 = vmax.f32 %v1075, 0.0
      %v1140 = vmax.f32 %v1076, 0.0
      %v1141 = vmax.f32 %v1077, 0.0
      %v1142 = vmax.f32 %v1078, 0.0
      %v1143 = vmax.f32 %v1079, 0.0
      %v1144 = vmax.f32 %v1080, 0.0
      %v1145 = vmax.f32 %v1081, 0.0
      %v1146 = vmax.f32 %v1082, 0.0
      %v1147 = vmax.f32 %v1083, 0.0
      %v1148 = vmax.f32 %v1084, 0.0
      %v1149 = vmax.f32 %v1085, 0.0
      %v1150 = vmax.f32 %v1086, 0.0
      %v1151 = vmax.f32 %v1087, 0.0
      %v1152 = vmax.f32 %v1088, 0.0
      %v1153 = vmax.f32 %v1089, 0.0
      %v1154 = vmax.f32 %v1090, 0.0
      %v1155 = vmax.f32 %v1091, 0.0
      %v1156 = vmax.f32 %v1092, 0.0
      %v1157 = vmax.f32 %v1093, 0.0
      %v1158 = vmax.f32 %v1094, 0.0
      %v1159 = vmax.f32 %v1095, 0.0
      %v1160 = vmax.f32 %v1096, 0.0
      %v1161 = vmax.f32 %v1097, 0.0
      %v1162 = vmax.f32 %v1098, 0.0
      %v1163 = vmax.f32 %v1099, 0.0
      %v1164 = vmax.f32 %v1100, 0.0
      %v1165 = vmax.f32 %v1101, 0.0
      %v1166 = vmax.f32 %v1102, 0.0
      %v1167 = vmax.f32 %v1103, 0.0
      %v1168 = vmax.f32 %v1104, 0.0
      %v1169 = vmax.f32 %v1105, 0.0
      %v1170 = vmax.f32 %v1106, 0.0
      %v1171 = vmax.f32 %v1107, 0.0
      %v1172 = vmax.f32 %v1108, 0.0
      %v1173 = vmax.f32 %v1109, 0.0
      %v1174 = vmax.f32 %v1110, 0.0
      %v1175 = vmax.f32 %v1111, 0.0
      %v1176 = vmax.f32 %v1112, 0.0
      %v1177 = vmax.f32 %v1113, 0.0
      %v1178 = vmax.f32 %v1114, 0.0
      %v1179 = vmax.f32 %v1115, 0.0
      %v1180 = vmax.f32 %v1116, 0.0
      %v1181 = vmax.f32 %v1117, 0.0
      %v1182 = vmax.f32 %v1118, 0.0
      %v1183 = vmax.f32 %v1119, 0.0
      %v1184 = vmax.f32 %v1120, 0.0
      %v1185 = vmax.f32 %v1121, 0.0
      %v1186 = vmax.f32 %v1122, 0.0
      %v1187 = vmax.f32 %v1123, 0.0
      %v1188 = vmax.f32 %v1124, 0.0
      %v1189 = vmax.f32 %v1125, 0.0
      %v1190 = vmax.f32 %v1126, 0.0
      %v1191 = vmax.f32 %v1127, 0.0
      %v1192 = vmax.f32 %v1128, 0.0
      %v1193 = vmax.f32 %v1129, 0.0
      %v1194 = vmax.f32 %v1130, 0.0
      %v1195 = vmax.f32 %v1131, 0.0
      %v1196 = vmax.f32 %v1132, 0.0
      %v1197 = vmax.f32 %v1133, 0.0
      %vm1198 = vcmask 64512
      %1199 = vst.msk [vmem:[%s230] sm:$0xff] %vm1198, %v1134
      %1200 = vst.msk [vmem:[%s230 + $0x8] sm:$0xff] %vm1198, %v1135
      %1201 = vst.msk [vmem:[%s230 + $0x10] sm:$0xff] %vm1198, %v1136
      %1202 = vst.msk [vmem:[%s230 + $0x18] sm:$0xff] %vm1198, %v1137
      %1203 = vst.msk [vmem:[%s230 + $0x20] sm:$0xff] %vm1198, %v1138
      %1204 = vst.msk [vmem:[%s230 + $0x28] sm:$0xff] %vm1198, %v1139
      %1205 = vst.msk [vmem:[%s230 + $0x30] sm:$0xff] %vm1198, %v1140
      %1206 = vst.msk [vmem:[%s230 + $0x38] sm:$0xff] %vm1198, %v1141
      %1207 = vst.msk [vmem:[%s230 + $0x40] sm:$0xff] %vm1198, %v1142
      %1208 = vst.msk [vmem:[%s230 + $0x48] sm:$0xff] %vm1198, %v1143
      %1209 = vst.msk [vmem:[%s230 + $0x50] sm:$0xff] %vm1198, %v1144
      %1210 = vst.msk [vmem:[%s230 + $0x58] sm:$0xff] %vm1198, %v1145
      %1211 = vst.msk [vmem:[%s230 + $0x60] sm:$0xff] %vm1198, %v1146
      %1212 = vst.msk [vmem:[%s230 + $0x68] sm:$0xff] %vm1198, %v1147
      %1213 = vst.msk [vmem:[%s230 + $0x70] sm:$0xff] %vm1198, %v1148
      %1214 = vst.msk [vmem:[%s230 + $0x78] sm:$0xff] %vm1198, %v1149
      %1215 = vst.msk [vmem:[%s230 + $0x80] sm:$0xff] %vm1198, %v1150
      %1216 = vst.msk [vmem:[%s230 + $0x88] sm:$0xff] %vm1198, %v1151
      %1217 = vst.msk [vmem:[%s230 + $0x90] sm:$0xff] %vm1198, %v1152
      %1218 = vst.msk [vmem:[%s230 + $0x98] sm:$0xff] %vm1198, %v1153
      %1219 = vst.msk [vmem:[%s230 + $0xa0] sm:$0xff] %vm1198, %v1154
      %1220 = vst.msk [vmem:[%s230 + $0xa8] sm:$0xff] %vm1198, %v1155
      %1221 = vst.msk [vmem:[%s230 + $0xb0] sm:$0xff] %vm1198, %v1156
      %1222 = vst.msk [vmem:[%s230 + $0xb8] sm:$0xff] %vm1198, %v1157
      %1223 = vst.msk [vmem:[%s230 + $0xc0] sm:$0xff] %vm1198, %v1158
      %1224 = vst.msk [vmem:[%s230 + $0xc8] sm:$0xff] %vm1198, %v1159
      %1225 = vst.msk [vmem:[%s230 + $0xd0] sm:$0xff] %vm1198, %v1160
      %1226 = vst.msk [vmem:[%s230 + $0xd8] sm:$0xff] %vm1198, %v1161
      %1227 = vst.msk [vmem:[%s230 + $0xe0] sm:$0xff] %vm1198, %v1162
      %1228 = vst.msk [vmem:[%s230 + $0xe8] sm:$0xff] %vm1198, %v1163
      %1229 = vst.msk [vmem:[%s230 + $0xf0] sm:$0xff] %vm1198, %v1164
      %1230 = vst.msk [vmem:[%s230 + $0xf8] sm:$0xff] %vm1198, %v1165
      %1231 = vst.msk [vmem:[%s230 + $0x100] sm:$0xff] %vm1198, %v1166
      %1232 = vst.msk [vmem:[%s230 + $0x108] sm:$0xff] %vm1198, %v1167
      %1233 = vst.msk [vmem:[%s230 + $0x110] sm:$0xff] %vm1198, %v1168
      %1234 = vst.msk [vmem:[%s230 + $0x118] sm:$0xff] %vm1198, %v1169
      %1235 = vst.msk [vmem:[%s230 + $0x120] sm:$0xff] %vm1198, %v1170
      %1236 = vst.msk [vmem:[%s230 + $0x128] sm:$0xff] %vm1198, %v1171
      %1237 = vst.msk [vmem:[%s230 + $0x130] sm:$0xff] %vm1198, %v1172
      %1238 = vst.msk [vmem:[%s230 + $0x138] sm:$0xff] %vm1198, %v1173
      %1239 = vst.msk [vmem:[%s230 + $0x140] sm:$0xff] %vm1198, %v1174
      %1240 = vst.msk [vmem:[%s230 + $0x148] sm:$0xff] %vm1198, %v1175
      %1241 = vst.msk [vmem:[%s230 + $0x150] sm:$0xff] %vm1198, %v1176
      %1242 = vst.msk [vmem:[%s230 + $0x158] sm:$0xff] %vm1198, %v1177
      %1243 = vst.msk [vmem:[%s230 + $0x160] sm:$0xff] %vm1198, %v1178
      %1244 = vst.msk [vmem:[%s230 + $0x168] sm:$0xff] %vm1198, %v1179
      %1245 = vst.msk [vmem:[%s230 + $0x170] sm:$0xff] %vm1198, %v1180
      %1246 = vst.msk [vmem:[%s230 + $0x178] sm:$0xff] %vm1198, %v1181
      %1247 = vst.msk [vmem:[%s230 + $0x180] sm:$0xff] %vm1198, %v1182
      %1248 = vst.msk [vmem:[%s230 + $0x188] sm:$0xff] %vm1198, %v1183
      %1249 = vst.msk [vmem:[%s230 + $0x190] sm:$0xff] %vm1198, %v1184
      %1250 = vst.msk [vmem:[%s230 + $0x198] sm:$0xff] %vm1198, %v1185
      %1251 = vst.msk [vmem:[%s230 + $0x1a0] sm:$0xff] %vm1198, %v1186
      %1252 = vst.msk [vmem:[%s230 + $0x1a8] sm:$0xff] %vm1198, %v1187
      %1253 = vst.msk [vmem:[%s230 + $0x1b0] sm:$0xff] %vm1198, %v1188
      %1254 = vst.msk [vmem:[%s230 + $0x1b8] sm:$0xff] %vm1198, %v1189
      %1255 = vst.msk [vmem:[%s230 + $0x1c0] sm:$0xff] %vm1198, %v1190
      %1256 = vst.msk [vmem:[%s230 + $0x1c8] sm:$0xff] %vm1198, %v1191
      %1257 = vst.msk [vmem:[%s230 + $0x1d0] sm:$0xff] %vm1198, %v1192
      %1258 = vst.msk [vmem:[%s230 + $0x1d8] sm:$0xff] %vm1198, %v1193
      %1259 = vst.msk [vmem:[%s230 + $0x1e0] sm:$0xff] %vm1198, %v1194
      %1260 = vst.msk [vmem:[%s230 + $0x1e8] sm:$0xff] %vm1198, %v1195
      %1261 = vst.msk [vmem:[%s230 + $0x1f0] sm:$0xff] %vm1198, %v1196
      %1262 = vst.msk [vmem:[%s230 + $0x1f8] sm:$0xff] %vm1198, %v1197
      %s1263 = smul.u32 64, %s19
      %p1264 = scmp.lt.s32.totalorder %s1263, 127
      %s1265 = scalar_select %p1264, %s1263, 127
      %s1266 = smul.addr %s1265, 8
      %s1267 = scalar_lea.vmem %s4, %s1266
      // Predicated region
      $region37: #{basic_block3d_v2.2} parent=35 // pred_check
        %p1268 = pneg %p136
      $region38: #{basic_block3d_v2.2} parent=35 // pred_check_branch
        %1270 = sbr.rel (%p1268) target = $region40
      $region39: #{basic_block3d_v2.2} parent=35 // pred_region
        %s1271 = smul.u32 64, %s19
      $region40: #{basic_block3d_v2.2} parent=35 // pred_fallthru
        _
    $region36: #{basic_block3d_v2.2} parent=5 // pred_fallthru
      _
    %p1272 = scmp.le.s32.totalorder 2, %s10
    // Predicated region
    $region41: #{basic_block3d_v2.2} parent=5 // pred_check
      %p1273 = pneg %p1272
    $region42: #{basic_block3d_v2.2} parent=5 // pred_check_branch
      %1275 = sbr.rel (%p1273) target = $region44
    $region43: #{basic_block3d_v2.2} parent=5 // pred_region
      %s1276 = ssub.s32 %s10, 2
      // Predicated region
      $region45: #{basic_block3d_v2.2} parent=43 // pred_check
        %p1277 = pneg %p142
      $region46: #{basic_block3d_v2.2} parent=43 // pred_check_branch
        %1279 = sbr.rel (%p1277) target = $region48
      $region47: #{basic_block3d_v2.2} parent=43 // pred_region
        %s1280 = smul.u32 64, %s21
        %p1281 = scmp.lt.s32.totalorder %s1280, 127
        %s1282 = scalar_select %p1281, %s1280, 127
        %s1283 = smul.addr %s1282, 8
        %s1284 = scalar_lea.vmem %s4, %s1283
      $region48: #{basic_block3d_v2.2} parent=43 // pred_fallthru
        _
    $region44: #{basic_block3d_v2.2} parent=5 // pred_fallthru
      _
  $region6: #{basic_block3d_v2.2} parent=0 // loop_footer
    %s14 = sadd.s32 1, %s10
  $region7: #{basic_block3d_v2.2} parent=0 // loop_footer_branch
    %9 = sbr.rel target = $region3
  $region8: #{basic_block3d_v2.2} parent=0 // loop_exit
    _

// kernel: basic_block3d_v2.3
$region0: #{basic_block3d_v2.3}
  #allocation0 [shape = 'u32[]', space=smem, size = 0x4, offset = 0x4, fixed_abs, tag = 'smem constant byte address 0x4 - core index']
  #allocation1 [shape = 'u32[72,128]{1,0:T(1,128)}', space=vmem, size = 0x9000, scoped, tag = 'internal scratch']
  %s0 = inlined_call_operand.vmem [shape: f32[1024,216], index: 0, kind: input, shape index: {}]
  %s1 = inlined_call_operand.vmem [shape: f32[216,8], index: 1, kind: input, shape index: {}]
  %s2 = inlined_call_operand.vmem [shape: f32[1,8], index: 2, kind: input, shape index: {}]
  %s3 = inlined_call_operand.vmem [shape: f32[1,8], index: 3, kind: input, shape index: {}]
  %s4 = inlined_call_operand.vmem [shape: f32[1024,8], index: 4, kind: input, shape index: {}]
  %s5 = inlined_call_operand.hbm [shape: f32[1024,8], index: 5, kind: output, shape index: {}]
  %s6 = sld [smem:[#allocation0]]
  $region53: #{basic_block3d_v2.3} parent=0
    _
  %s8 = ssub.s32 1, %s6
  %s9 = scalar_select 0, %s8, %s6
  $region1: #{basic_block3d_v2.3} parent=0
    #allocation2 [shape = 'u8[524288]{0}', space=vmem, size = 0x80000, scoped, tag = 'output window, operand 0']
    #allocation3 [shape = 's32[2]{0}', space=sflag, size = 0x8, scoped, tag = 'scoped memory for basic_block3d_v2.3']
    %10 = vsyncpa [#allocation3], 0
    %s11 = scalar_lea.sflag [#allocation3], 1
    %12 = vsyncpa %s11, 0
    loop: start=0, step=1, limit=4
    $region2: #{basic_block3d_v2.3} parent=1 // loop_pre_header
      _
    $region3: #{basic_block3d_v2.3} parent=1 // loop_header
      %s14 = sphi 0, %s18
      %p15 = scmp.ge.s32.totalorder %s14, 4
      %s21 = sphi 0, %s33
      %s22 = sphi 0, %s29
      %s23 = sphi 0, %s21
      %s24 = sphi 0, %s22
      %s25 = sphi 0, %s23
      %s26 = sphi 0, %s24
      %s38 = sphi 0, %s40
      %s41 = sphi 0, %s38
      %s42 = sphi 0, %s41
      %s58 = sphi 0, %s42
      %s62 = sphi 0, %s62
      %s64 = sphi 0, %s62
      %s65 = sphi 0, %s64
      %s79 = sphi 0, %s65
      %s83 = sphi 0, %s83
      %s85 = sphi 0, %s83
      %s86 = sphi 0, %s85
      %s100 = sphi 0, %s86
      %s104 = sphi 0, %s104
      %s106 = sphi 0, %s104
      %s107 = sphi 0, %s106
      %s121 = sphi 0, %s107
      %s127 = sphi 0, %s129
      %s130 = sphi 0, %s127
      %s131 = sphi 0, %s130
      %s147 = sphi 0, %s131
      %s153 = sphi 0, %s155
      %s156 = sphi 0, %s153
      %s157 = sphi 0, %s156
      %s173 = sphi 0, %s157
    $region4: #{basic_block3d_v2.3} parent=1 // loop_header_branch
      %17 = sbr.rel (%p15) target = $region8
    $region5: #{basic_block3d_v2.3} parent=1 // loop_body
      %s19 = ssub.s32 %s14, 1
      %s20 = ssub.s32 %s14, 2
      %s27 = sadd.s32 1, %s22
      %p28 = scmp.ge.s32.totalorder %s27, 1
      %s29 = scalar_select %p28, 0, %s27
      %s30 = sadd.s32 1, %s21
      %s31 = scalar_select %p28, %s30, %s21
      %p32 = scmp.ge.s32.totalorder %s31, 2
      %s33 = scalar_select %p32, 0, %s31
      %s34 = ssub.s32 %s21, %s33
      %s35 = ssub.s32 %s22, %s29
      %s36 = sor.u32 %s34, %s35
      %p37 = scmp.eq.s32.totalorder %s36, 0
      %s39 = sadd.s32 %s38, 1
      %s40 = scalar_select %p37, %s38, %s39
      %p43 = pneg %p37
      %p44 = scmp.eq.s32.totalorder %s14, 1
      %p45 = por %p43, %p44
      %p46 = scmp.ne.s32.totalorder %s38, %s41
      %p47 = scmp.eq.s32.totalorder %s14, 0
      %p48 = por %p46, %p47
      %p49 = scmp.ne.s32.totalorder %s38, %s41
      %p50 = scmp.eq.s32.totalorder %s19, 1
      %p51 = por %p49, %p50
      %p52 = scmp.ne.s32.totalorder %s41, %s42
      %p53 = scmp.eq.s32.totalorder %s19, 0
      %p54 = por %p52, %p53
      %p55 = scmp.ne.s32.totalorder %s41, %s42
      %p56 = scmp.eq.s32.totalorder %s20, 1
      %p57 = por %p55, %p56
      %p59 = scmp.ne.s32.totalorder %s42, %s58
      %p60 = scmp.eq.s32.totalorder %s20, 0
      %p61 = por %p59, %p60
      %s63 = sadd.s32 %s62, 1
      %p66 = scmp.eq.s32.totalorder %s14, 1
      %p67 = scmp.ne.s32.totalorder %s62, %s64
      %p68 = scmp.eq.s32.totalorder %s14, 0
      %p69 = por %p67, %p68
      %p70 = scmp.ne.s32.totalorder %s62, %s64
      %p71 = scmp.eq.s32.totalorder %s19, 1
      %p72 = por %p70, %p71
      %p73 = scmp.ne.s32.totalorder %s64, %s65
      %p74 = scmp.eq.s32.totalorder %s19, 0
      %p75 = por %p73, %p74
      %p76 = scmp.ne.s32.totalorder %s64, %s65
      %p77 = scmp.eq.s32.totalorder %s20, 1
      %p78 = por %p76, %p77
      %p80 = scmp.ne.s32.totalorder %s65, %s79
      %p81 = scmp.eq.s32.totalorder %s20, 0
      %p82 = por %p80, %p81
      %s84 = sadd.s32 %s83, 1
      %p87 = scmp.eq.s32.totalorder %s14, 1
      %p88 = scmp.ne.s32.totalorder %s83, %s85
      %p89 = scmp.eq.s32.totalorder %s14, 0
      %p90 = por %p88, %p89
      %p91 = scmp.ne.s32.totalorder %s83, %s85
      %p92 = scmp.eq.s32.totalorder %s19, 1
      %p93 = por %p91, %p92
      %p94 = scmp.ne.s32.totalorder %s85, %s86
      %p95 = scmp.eq.s32.totalorder %s19, 0
      %p96 = por %p94, %p95
      %p97 = scmp.ne.s32.totalorder %s85, %s86
      %p98 = scmp.eq.s32.totalorder %s20, 1
      %p99 = por %p97, %p98
      %p101 = scmp.ne.s32.totalorder %s86, %s100
      %p102 = scmp.eq.s32.totalorder %s20, 0
      %p103 = por %p101, %p102
      %s105 = sadd.s32 %s104, 1
      %p108 = scmp.eq.s32.totalorder %s14, 1
      %p109 = scmp.ne.s32.totalorder %s104, %s106
      %p110 = scmp.eq.s32.totalorder %s14, 0
      %p111 = por %p109, %p110
      %p112 = scmp.ne.s32.totalorder %s104, %s106
      %p113 = scmp.eq.s32.totalorder %s19, 1
      %p114 = por %p112, %p113
      %p115 = scmp.ne.s32.totalorder %s106, %s107
      %p116 = scmp.eq.s32.totalorder %s19, 0
      %p117 = por %p115, %p116
      %p118 = scmp.ne.s32.totalorder %s106, %s107
      %p119 = scmp.eq.s32.totalorder %s20, 1
      %p120 = por %p118, %p119
      %p122 = scmp.ne.s32.totalorder %s107, %s121
      %p123 = scmp.eq.s32.totalorder %s20, 0
      %p124 = por %p122, %p123
      %s125 = ssub.s32 %s21, %s33
      %p126 = scmp.eq.s32.totalorder %s125, 0
      %s128 = sadd.s32 %s127, 1
      %s129 = scalar_select %p126, %s127, %s128
      %p132 = pneg %p126
      %p133 = scmp.eq.s32.totalorder %s14, 1
      %p134 = por %p132, %p133
      %p135 = scmp.ne.s32.totalorder %s127, %s130
      %p136 = scmp.eq.s32.totalorder %s14, 0
      %p137 = por %p135, %p136
      %p138 = scmp.ne.s32.totalorder %s127, %s130
      %p139 = scmp.eq.s32.totalorder %s19, 1
      %p140 = por %p138, %p139
      %p141 = scmp.ne.s32.totalorder %s130, %s131
      %p142 = scmp.eq.s32.totalorder %s19, 0
      %p143 = por %p141, %p142
      %p144 = scmp.ne.s32.totalorder %s130, %s131
      %p145 = scmp.eq.s32.totalorder %s20, 1
      %p146 = por %p144, %p145
      %p148 = scmp.ne.s32.totalorder %s131, %s147
      %p149 = scmp.eq.s32.totalorder %s20, 0
      %p150 = por %p148, %p149
      %s151 = ssub.s32 %s21, %s33
      %p152 = scmp.eq.s32.totalorder %s151, 0
      %s154 = sadd.s32 %s153, 1
      %s155 = scalar_select %p152, %s153, %s154
      %p158 = pneg %p152
      %p159 = scmp.eq.s32.totalorder %s14, 1
      %p160 = por %p158, %p159
      %p161 = scmp.ne.s32.totalorder %s153, %s156
      %p162 = scmp.eq.s32.totalorder %s14, 0
      %p163 = por %p161, %p162
      %p164 = scmp.ne.s32.totalorder %s153, %s156
      %p165 = scmp.eq.s32.totalorder %s19, 1
      %p166 = por %p164, %p165
      %p167 = scmp.ne.s32.totalorder %s156, %s157
      %p168 = scmp.eq.s32.totalorder %s19, 0
      %p169 = por %p167, %p168
      %p170 = scmp.ne.s32.totalorder %s156, %s157
      %p171 = scmp.eq.s32.totalorder %s20, 1
      %p172 = por %p170, %p171
      %p174 = scmp.ne.s32.totalorder %s157, %s173
      %p175 = scmp.eq.s32.totalorder %s20, 0
      %p176 = por %p174, %p175
      %p177 = scmp.le.s32.totalorder 1, %s14
      %p178 = scmp.lt.s32.totalorder %s14, 3
      %p179 = pnand %p177, %p178
      %p180 = pneg %p179
      // Predicated region
      $region9: #{basic_block3d_v2.3} parent=5 // pred_check
        _
      $region10: #{basic_block3d_v2.3} parent=5 // pred_check_branch
        %182 = sbr.rel (%p179) target = $region12
      $region11: #{basic_block3d_v2.3} parent=5 // pred_region
        %s183 = ssub.s32 %s14, 1
        // Predicated region
        $region13: #{basic_block3d_v2.3} parent=11 // pred_check
          %p184 = pneg %p75
        $region14: #{basic_block3d_v2.3} parent=11 // pred_check_branch
          %186 = sbr.rel (%p184) target = $region16
        $region15: #{basic_block3d_v2.3} parent=11 // pred_region
          _
        $region16: #{basic_block3d_v2.3} parent=11 // pred_fallthru
          _
        // Predicated region
        $region17: #{basic_block3d_v2.3} parent=11 // pred_check
          %p187 = pneg %p96
        $region18: #{basic_block3d_v2.3} parent=11 // pred_check_branch
          %189 = sbr.rel (%p187) target = $region20
        $region19: #{basic_block3d_v2.3} parent=11 // pred_region
          _
        $region20: #{basic_block3d_v2.3} parent=11 // pred_fallthru
          _
        // Predicated region
        $region21: #{basic_block3d_v2.3} parent=11 // pred_check
          %p190 = pneg %p117
        $region22: #{basic_block3d_v2.3} parent=11 // pred_check_branch
          %192 = sbr.rel (%p190) target = $region24
        $region23: #{basic_block3d_v2.3} parent=11 // pred_region
          _
        $region24: #{basic_block3d_v2.3} parent=11 // pred_fallthru
          _
      $region12: #{basic_block3d_v2.3} parent=5 // pred_fallthru
        _
      %p193 = scmp.lt.s32.totalorder %s14, 2
      // Predicated region
      $region25: #{basic_block3d_v2.3} parent=5 // pred_check
        %p194 = pneg %p193
      $region26: #{basic_block3d_v2.3} parent=5 // pred_check_branch
        %196 = sbr.rel (%p194) target = $region28
      $region27: #{basic_block3d_v2.3} parent=5 // pred_region
        // Predicated region
        $region29: #{basic_block3d_v2.3} parent=27 // pred_check
          %p197 = pneg %p48
        $region30: #{basic_block3d_v2.3} parent=27 // pred_check_branch
          %199 = sbr.rel (%p197) target = $region32
        $region31: #{basic_block3d_v2.3} parent=27 // pred_region
          %s200 = smul.u32 64, %s21
          %s201 = smul.u32 2, %s22
          %p202 = scmp.lt.s32.totalorder %s200, 127
          %s203 = scalar_select %p202, %s200, 127
          %p204 = scmp.lt.s32.totalorder %s201, 1
          %s205 = scalar_select %p204, %s201, 1
          %s206 = smul.addr %s203, 2
          %s207 = sadd.s32 %s205, %s206
          %s208 = smul.addr %s207, 8
          %s209 = scalar_lea.vmem %s0, %s208
          %s210 = smul.u32 64, %s21
          %s211 = smul.u32 2, %s22
        $region32: #{basic_block3d_v2.3} parent=27 // pred_fallthru
          _
        // Predicated region
        $region33: #{basic_block3d_v2.3} parent=27 // pred_check
          %p212 = pneg %p137
        $region34: #{basic_block3d_v2.3} parent=27 // pred_check_branch
          %214 = sbr.rel (%p212) target = $region36
        $region35: #{basic_block3d_v2.3} parent=27 // pred_region
          %s215 = smul.u32 64, %s21
          %p216 = scmp.lt.s32.totalorder %s215, 127
          %s217 = scalar_select %p216, %s215, 127
          %s218 = smul.addr %s217, 8
          %s219 = scalar_lea.vmem %s4, %s218
          %s220 = smul.u32 64, %s21
        $region36: #{basic_block3d_v2.3} parent=27 // pred_fallthru
          _
      $region28: #{basic_block3d_v2.3} parent=5 // pred_fallthru
        _
      %p221 = scmp.le.s32.totalorder 1, %s14
      %p222 = scmp.lt.s32.totalorder %s14, 3
      %p223 = pnand %p221, %p222
      %p224 = pneg %p223
      // Predicated region
      $region37: #{basic_block3d_v2.3} parent=5 // pred_check
        _
      $region38: #{basic_block3d_v2.3} parent=5 // pred_check_branch
        %226 = sbr.rel (%p223) target = $region40
      $region39: #{basic_block3d_v2.3} parent=5 // pred_region
        %s227 = ssub.s32 %s14, 1
        %s228 = smul.u32 64, %s23
        %s229 = smul.u32 2, %s24
        %p230 = scmp.lt.s32.totalorder %s228, 127
        %s231 = scalar_select %p230, %s228, 127
        %p232 = scmp.lt.s32.totalorder %s229, 1
        %s233 = scalar_select %p232, %s229, 1
        %s234 = smul.addr %s231, 2
        %s235 = sadd.s32 %s233, %s234
        %s236 = smul.addr %s235, 8
        %s237 = scalar_lea.vmem %s0, %s236
        %p238 = pneg %p54
        %p239 = pneg %p51
        %p240 = pneg %p75
        %p241 = pneg %p72
        %p242 = pneg %p96
        %p243 = pneg %p93
        %p244 = pneg %p117
        %p245 = pneg %p114
        %s246 = smul.u32 64, %s23
        %p247 = scmp.lt.s32.totalorder %s246, 127
        %s248 = scalar_select %p247, %s246, 127
        %s249 = smul.addr %s248, 8
        %s250 = scalar_lea.vmem %s4, %s249
        %p251 = pneg %p143
        %p252 = pneg %p140
        %p253 = pneg %p169
        %p254 = pneg %p166
        %s255 = sand.u32 %s156, 1
        %s256 = scalar_lea.sflag [#allocation3], %s255
        %s257 = sand.u32 %s156, 1
        %s258 = smul.addr %s257, 512
        %s259 = scalar_lea.vmem [#allocation2], %s258
        %s260 = smul.u32 64, %s23
        %s261 = smul.u32 2, %s24
        %p262 = scmp.lt.s32.totalorder %s260, 127
        %s263 = scalar_select %p262, %s260, 127
        %p264 = scmp.lt.s32.totalorder %s261, 1
        %s265 = scalar_select %p264, %s261, 1
        %s266 = smul.addr %s263, 2
        %s267 = sadd.s32 %s265, %s266
        %s268 = smul.addr %s267, 8
        %s269 = scalar_lea.vmem %s0, %s268
        %s270 = smul.u32 64, %s23
        %s271 = smul.u32 2, %s24
        %s272 = smul.u32 64, %s23
        %p273 = scmp.lt.s32.totalorder %s272, 127
        %s274 = scalar_select %p273, %s272, 127
        %s275 = smul.addr %s274, 8
        %s276 = scalar_lea.vmem %s4, %s275
        %s277 = smul.u32 64, %s23
        %s278 = smul.u32 64, %s23
        %v279 = vld [vmem:[%s269] sm:$0xff]
        %v280 = vld [vmem:[%s269 + $0x8] sm:$0xff]
        %v281 = vld [vmem:[%s269 + $0x10] sm:$0xff]
        %v282 = vld [vmem:[%s269 + $0x18] sm:$0xff]
        %v283 = vld [vmem:[%s269 + $0x20] sm:$0xff]
        %v284 = vld [vmem:[%s269 + $0x28] sm:$0xff]
        %v285 = vld [vmem:[%s269 + $0x30] sm:$0xff]
        %v286 = vld [vmem:[%s269 + $0x38] sm:$0xff]
        %v287 = vld [vmem:[%s269 + $0x40] sm:$0xff]
        %v288 = vld [vmem:[%s269 + $0x48] sm:$0xff]
        %v289 = vld [vmem:[%s269 + $0x50] sm:$0xff]
        %v290 = vld [vmem:[%s269 + $0x58] sm:$0xff]
        %v291 = vld [vmem:[%s269 + $0x60] sm:$0xff]
        %v292 = vld [vmem:[%s269 + $0x68] sm:$0xff]
        %v293 = vld [vmem:[%s269 + $0x70] sm:$0xff]
        %v294 = vld [vmem:[%s269 + $0x78] sm:$0xff]
        %v295 = vld [vmem:[%s269 + $0x80] sm:$0xff]
        %v296 = vld [vmem:[%s269 + $0x88] sm:$0xff]
        %v297 = vld [vmem:[%s269 + $0x90] sm:$0xff]
        %v298 = vld [vmem:[%s269 + $0x98] sm:$0xff]
        %v299 = vld [vmem:[%s269 + $0xa0] sm:$0xff]
        %v300 = vld [vmem:[%s269 + $0xa8] sm:$0xff]
        %v301 = vld [vmem:[%s269 + $0xb0] sm:$0xff]
        %v302 = vld [vmem:[%s269 + $0xb8] sm:$0xff]
        %v303 = vld [vmem:[%s269 + $0xc0] sm:$0xff]
        %v304 = vld [vmem:[%s269 + $0xc8] sm:$0xff]
        %v305 = vld [vmem:[%s269 + $0xd0] sm:$0xff]
        %v306 = vld [vmem:[%s269 + $0xd8] sm:$0xff]
        %v307 = vld [vmem:[%s269 + $0xe0] sm:$0xff]
        %v308 = vld [vmem:[%s269 + $0xe8] sm:$0xff]
        %v309 = vld [vmem:[%s269 + $0xf0] sm:$0xff]
        %v310 = vld [vmem:[%s269 + $0xf8] sm:$0xff]
        %v311 = vld [vmem:[%s269 + $0x100] sm:$0xff]
        %v312 = vld [vmem:[%s269 + $0x108] sm:$0xff]
        %v313 = vld [vmem:[%s269 + $0x110] sm:$0xff]
        %v314 = vld [vmem:[%s269 + $0x118] sm:$0xff]
        %v315 = vld [vmem:[%s269 + $0x120] sm:$0xff]
        %v316 = vld [vmem:[%s269 + $0x128] sm:$0xff]
        %v317 = vld [vmem:[%s269 + $0x130] sm:$0xff]
        %v318 = vld [vmem:[%s269 + $0x138] sm:$0xff]
        %v319 = vld [vmem:[%s269 + $0x140] sm:$0xff]
        %v320 = vld [vmem:[%s269 + $0x148] sm:$0xff]
        %v321 = vld [vmem:[%s269 + $0x150] sm:$0xff]
        %v322 = vld [vmem:[%s269 + $0x158] sm:$0xff]
        %v323 = vld [vmem:[%s269 + $0x160] sm:$0xff]
        %v324 = vld [vmem:[%s269 + $0x168] sm:$0xff]
        %v325 = vld [vmem:[%s269 + $0x170] sm:$0xff]
        %v326 = vld [vmem:[%s269 + $0x178] sm:$0xff]
        %v327 = vld [vmem:[%s269 + $0x180] sm:$0xff]
        %v328 = vld [vmem:[%s269 + $0x188] sm:$0xff]
        %v329 = vld [vmem:[%s269 + $0x190] sm:$0xff]
        %v330 = vld [vmem:[%s269 + $0x198] sm:$0xff]
        %v331 = vld [vmem:[%s269 + $0x1a0] sm:$0xff]
        %v332 = vld [vmem:[%s269 + $0x1a8] sm:$0xff]
        %v333 = vld [vmem:[%s269 + $0x1b0] sm:$0xff]
        %v334 = vld [vmem:[%s269 + $0x1b8] sm:$0xff]
        %v335 = vld [vmem:[%s269 + $0x1c0] sm:$0xff]
        %v336 = vld [vmem:[%s269 + $0x1c8] sm:$0xff]
        %v337 = vld [vmem:[%s269 + $0x1d0] sm:$0xff]
        %v338 = vld [vmem:[%s269 + $0x1d8] sm:$0xff]
        %v339 = vld [vmem:[%s269 + $0x1e0] sm:$0xff]
        %v340 = vld [vmem:[%s269 + $0x1e8] sm:$0xff]
        %v341 = vld [vmem:[%s269 + $0x1f0] sm:$0xff]
        %v342 = vld [vmem:[%s269 + $0x1f8] sm:$0xff]
        %v343 = vld [vmem:[%s269 + $0x200] sm:$0xff]
        %v344 = vld [vmem:[%s269 + $0x208] sm:$0xff]
        %v345 = vld [vmem:[%s269 + $0x210] sm:$0xff]
        %v346 = vld [vmem:[%s269 + $0x218] sm:$0xff]
        %v347 = vld [vmem:[%s269 + $0x220] sm:$0xff]
        %v348 = vld [vmem:[%s269 + $0x228] sm:$0xff]
        %v349 = vld [vmem:[%s269 + $0x230] sm:$0xff]
        %v350 = vld [vmem:[%s269 + $0x238] sm:$0xff]
        %v351 = vld [vmem:[%s269 + $0x240] sm:$0xff]
        %v352 = vld [vmem:[%s269 + $0x248] sm:$0xff]
        %v353 = vld [vmem:[%s269 + $0x250] sm:$0xff]
        %v354 = vld [vmem:[%s269 + $0x258] sm:$0xff]
        %v355 = vld [vmem:[%s269 + $0x260] sm:$0xff]
        %v356 = vld [vmem:[%s269 + $0x268] sm:$0xff]
        %v357 = vld [vmem:[%s269 + $0x270] sm:$0xff]
        %v358 = vld [vmem:[%s269 + $0x278] sm:$0xff]
        %v359 = vld [vmem:[%s269 + $0x280] sm:$0xff]
        %v360 = vld [vmem:[%s269 + $0x288] sm:$0xff]
        %v361 = vld [vmem:[%s269 + $0x290] sm:$0xff]
        %v362 = vld [vmem:[%s269 + $0x298] sm:$0xff]
        %v363 = vld [vmem:[%s269 + $0x2a0] sm:$0xff]
        %v364 = vld [vmem:[%s269 + $0x2a8] sm:$0xff]
        %v365 = vld [vmem:[%s269 + $0x2b0] sm:$0xff]
        %v366 = vld [vmem:[%s269 + $0x2b8] sm:$0xff]
        %v367 = vld [vmem:[%s269 + $0x2c0] sm:$0xff]
        %v368 = vld [vmem:[%s269 + $0x2c8] sm:$0xff]
        %v369 = vld [vmem:[%s269 + $0x2d0] sm:$0xff]
        %v370 = vld [vmem:[%s269 + $0x2d8] sm:$0xff]
        %v371 = vld [vmem:[%s269 + $0x2e0] sm:$0xff]
        %v372 = vld [vmem:[%s269 + $0x2e8] sm:$0xff]
        %v373 = vld [vmem:[%s269 + $0x2f0] sm:$0xff]
        %v374 = vld [vmem:[%s269 + $0x2f8] sm:$0xff]
        %v375 = vld [vmem:[%s269 + $0x300] sm:$0xff]
        %v376 = vld [vmem:[%s269 + $0x308] sm:$0xff]
        %v377 = vld [vmem:[%s269 + $0x310] sm:$0xff]
        %v378 = vld [vmem:[%s269 + $0x318] sm:$0xff]
        %v379 = vld [vmem:[%s269 + $0x320] sm:$0xff]
        %v380 = vld [vmem:[%s269 + $0x328] sm:$0xff]
        %v381 = vld [vmem:[%s269 + $0x330] sm:$0xff]
        %v382 = vld [vmem:[%s269 + $0x338] sm:$0xff]
        %v383 = vld [vmem:[%s269 + $0x340] sm:$0xff]
        %v384 = vld [vmem:[%s269 + $0x348] sm:$0xff]
        %v385 = vld [vmem:[%s269 + $0x350] sm:$0xff]
        %v386 = vld [vmem:[%s269 + $0x358] sm:$0xff]
        %v387 = vld [vmem:[%s269 + $0x360] sm:$0xff]
        %v388 = vld [vmem:[%s269 + $0x368] sm:$0xff]
        %v389 = vld [vmem:[%s269 + $0x370] sm:$0xff]
        %v390 = vld [vmem:[%s269 + $0x378] sm:$0xff]
        %v391 = vld [vmem:[%s269 + $0x380] sm:$0xff]
        %v392 = vld [vmem:[%s269 + $0x388] sm:$0xff]
        %v393 = vld [vmem:[%s269 + $0x390] sm:$0xff]
        %v394 = vld [vmem:[%s269 + $0x398] sm:$0xff]
        %v395 = vld [vmem:[%s269 + $0x3a0] sm:$0xff]
        %v396 = vld [vmem:[%s269 + $0x3a8] sm:$0xff]
        %v397 = vld [vmem:[%s269 + $0x3b0] sm:$0xff]
        %v398 = vld [vmem:[%s269 + $0x3b8] sm:$0xff]
        %v399 = vld [vmem:[%s269 + $0x3c0] sm:$0xff]
        %v400 = vld [vmem:[%s269 + $0x3c8] sm:$0xff]
        %v401 = vld [vmem:[%s269 + $0x3d0] sm:$0xff]
        %v402 = vld [vmem:[%s269 + $0x3d8] sm:$0xff]
        %v403 = vld [vmem:[%s269 + $0x3e0] sm:$0xff]
        %v404 = vld [vmem:[%s269 + $0x3e8] sm:$0xff]
        %v405 = vld [vmem:[%s269 + $0x3f0] sm:$0xff]
        %v406 = vld [vmem:[%s269 + $0x3f8] sm:$0xff]
        %v407 = vld [vmem:[%s1] sm:$0xff]
        %v408 = vld [vmem:[%s1 + $0x8] sm:$0xff]
        %v409 = vld [vmem:[%s1 + $0x10] sm:$0xff]
        %v410 = vld [vmem:[%s1 + $0x18] sm:$0xff]
        %v411 = vld [vmem:[%s1 + $0x20] sm:$0xff]
        %v412 = vld [vmem:[%s1 + $0x28] sm:$0xff]
        %v413 = vld [vmem:[%s1 + $0x30] sm:$0xff]
        %v414 = vld [vmem:[%s1 + $0x38] sm:$0xff]
        %v415 = vld [vmem:[%s1 + $0x40] sm:$0xff]
        %v416 = vld [vmem:[%s1 + $0x48] sm:$0xff]
        %v417 = vld [vmem:[%s1 + $0x50] sm:$0xff]
        %v418 = vld [vmem:[%s1 + $0x58] sm:$0xff]
        %v419 = vld [vmem:[%s1 + $0x60] sm:$0xff]
        %v420 = vld [vmem:[%s1 + $0x68] sm:$0xff]
        %v421 = vld [vmem:[%s1 + $0x70] sm:$0xff]
        %v422 = vld [vmem:[%s1 + $0x78] sm:$0xff]
        %v423 = vld [vmem:[%s1 + $0x80] sm:$0xff]
        %v424 = vld [vmem:[%s1 + $0x88] sm:$0xff]
        %v425 = vld [vmem:[%s1 + $0x90] sm:$0xff]
        %v426 = vld [vmem:[%s1 + $0x98] sm:$0xff]
        %v427 = vld [vmem:[%s1 + $0xa0] sm:$0xff]
        %v428 = vld [vmem:[%s1 + $0xa8] sm:$0xff]
        %v429 = vld [vmem:[%s1 + $0xb0] sm:$0xff]
        %v430 = vld [vmem:[%s1 + $0xb8] sm:$0xff]
        %v431 = vld [vmem:[%s1 + $0xc0] sm:$0xff]
        %v432 = vld [vmem:[%s1 + $0xc8] sm:$0xff]
        %v433 = vld [vmem:[%s1 + $0xd0] sm:$0xff]
        %vm434 = vcmask 719872
        %v436 = vsel %vm434, %v280, 0
        %v439 = vsel %vm434, %v282, 0
        %v442 = vsel %vm434, %v284, 0
        %v445 = vsel %vm434, %v286, 0
        %v448 = vsel %vm434, %v288, 0
        %v451 = vsel %vm434, %v290, 0
        %v454 = vsel %vm434, %v292, 0
        %v457 = vsel %vm434, %v294, 0
        %v460 = vsel %vm434, %v296, 0
        %v463 = vsel %vm434, %v298, 0
        %v466 = vsel %vm434, %v300, 0
        %v469 = vsel %vm434, %v302, 0
        %v472 = vsel %vm434, %v304, 0
        %v475 = vsel %vm434, %v306, 0
        %v478 = vsel %vm434, %v308, 0
        %v481 = vsel %vm434, %v310, 0
        %v484 = vsel %vm434, %v312, 0
        %v487 = vsel %vm434, %v314, 0
        %v490 = vsel %vm434, %v316, 0
        %v493 = vsel %vm434, %v318, 0
        %v496 = vsel %vm434, %v320, 0
        %v499 = vsel %vm434, %v322, 0
        %v502 = vsel %vm434, %v324, 0
        %v505 = vsel %vm434, %v326, 0
        %v508 = vsel %vm434, %v328, 0
        %v511 = vsel %vm434, %v330, 0
        %v514 = vsel %vm434, %v332, 0
        %v517 = vsel %vm434, %v334, 0
        %v520 = vsel %vm434, %v336, 0
        %v523 = vsel %vm434, %v338, 0
        %v526 = vsel %vm434, %v340, 0
        %v529 = vsel %vm434, %v342, 0
        %v532 = vsel %vm434, %v344, 0
        %v535 = vsel %vm434, %v346, 0
        %v538 = vsel %vm434, %v348, 0
        %v541 = vsel %vm434, %v350, 0
        %v544 = vsel %vm434, %v352, 0
        %v547 = vsel %vm434, %v354, 0
        %v550 = vsel %vm434, %v356, 0
        %v553 = vsel %vm434, %v358, 0
        %v556 = vsel %vm434, %v360, 0
        %v559 = vsel %vm434, %v362, 0
        %v562 = vsel %vm434, %v364, 0
        %v565 = vsel %vm434, %v366, 0
        %v568 = vsel %vm434, %v368, 0
        %v571 = vsel %vm434, %v370, 0
        %v574 = vsel %vm434, %v372, 0
        %v577 = vsel %vm434, %v374, 0
        %v580 = vsel %vm434, %v376, 0
        %v583 = vsel %vm434, %v378, 0
        %v586 = vsel %vm434, %v380, 0
        %v589 = vsel %vm434, %v382, 0
        %v592 = vsel %vm434, %v384, 0
        %v595 = vsel %vm434, %v386, 0
        %v598 = vsel %vm434, %v388, 0
        %v601 = vsel %vm434, %v390, 0
        %v604 = vsel %vm434, %v392, 0
        %v607 = vsel %vm434, %v394, 0
        %v610 = vsel %vm434, %v396, 0
        %v613 = vsel %vm434, %v398, 0
        %v616 = vsel %vm434, %v400, 0
        %v619 = vsel %vm434, %v402, 0
        %v622 = vsel %vm434, %v404, 0
        %v625 = vsel %vm434, %v406, 0
        %627 = vmatpush.msra.mxu0 %v422
        %628 = vmatpush.msra.mxu0 %v421
        %629 = vmatpush.msra.mxu0 %v420
        %630 = vmatpush.msra.mxu0 %v419
        %631 = vmatpush.msra.mxu0 %v418
        %632 = vmatpush.msra.mxu0 %v417
        %633 = vmatpush.msra.mxu0 %v416
        %634 = vmatpush.msra.mxu0 %v415
        %635 = vmatpush.msra.mxu0 %v414
        %636 = vmatpush.msra.mxu0 %v413
        %637 = vmatpush.msra.mxu0 %v412
        %638 = vmatpush.msra.mxu0 %v411
        %639 = vmatpush.msra.mxu0 %v410
        %640 = vmatpush.msra.mxu0 %v409
        %641 = vmatpush.msra.mxu0 %v408
        %642 = vmatpush.msra.mxu0 %v407
        %643 = vmatmul.f32.gmra.mxu0 %v279
        %v644 = vpop.f32.mrf.mxu0
        %v645 = vadd.f32 0.0, %v644
        %646 = vmatmul.f32.gmra.mxu0 %v281
        %v647 = vpop.f32.mrf.mxu0
        %v648 = vadd.f32 0.0, %v647
        %649 = vmatmul.f32.gmra.mxu0 %v283
        %v650 = vpop.f32.mrf.mxu0
        %v651 = vadd.f32 0.0, %v650
        %652 = vmatmul.f32.gmra.mxu0 %v285
        %v653 = vpop.f32.mrf.mxu0
        %v654 = vadd.f32 0.0, %v653
        %655 = vmatmul.f32.gmra.mxu0 %v287
        %v656 = vpop.f32.mrf.mxu0
        %v657 = vadd.f32 0.0, %v656
        %658 = vmatmul.f32.gmra.mxu0 %v289
        %v659 = vpop.f32.mrf.mxu0
        %v660 = vadd.f32 0.0, %v659
        %661 = vmatmul.f32.gmra.mxu0 %v291
        %v662 = vpop.f32.mrf.mxu0
        %v663 = vadd.f32 0.0, %v662
        %664 = vmatmul.f32.gmra.mxu0 %v293
        %v665 = vpop.f32.mrf.mxu0
        %v666 = vadd.f32 0.0, %v665
        %667 = vmatmul.f32.gmra.mxu0 %v295
        %v668 = vpop.f32.mrf.mxu0
        %v669 = vadd.f32 0.0, %v668
        %670 = vmatmul.f32.gmra.mxu0 %v297
        %v671 = vpop.f32.mrf.mxu0
        %v672 = vadd.f32 0.0, %v671
        %673 = vmatmul.f32.gmra.mxu0 %v299
        %v674 = vpop.f32.mrf.mxu0
        %v675 = vadd.f32 0.0, %v674
        %676 = vmatmul.f32.gmra.mxu0 %v301
        %v677 = vpop.f32.mrf.mxu0
        %v678 = vadd.f32 0.0, %v677
        %679 = vmatmul.f32.gmra.mxu0 %v303
        %v680 = vpop.f32.mrf.mxu0
        %v681 = vadd.f32 0.0, %v680
        %682 = vmatmul.f32.gmra.mxu0 %v305
        %v683 = vpop.f32.mrf.mxu0
        %v684 = vadd.f32 0.0, %v683
        %685 = vmatmul.f32.gmra.mxu0 %v307
        %v686 = vpop.f32.mrf.mxu0
        %v687 = vadd.f32 0.0, %v686
        %688 = vmatmul.f32.gmra.mxu0 %v309
        %v689 = vpop.f32.mrf.mxu0
        %v690 = vadd.f32 0.0, %v689
        %691 = vmatmul.f32.gmra.mxu0 %v311
        %v692 = vpop.f32.mrf.mxu0
        %v693 = vadd.f32 0.0, %v692
        %694 = vmatmul.f32.gmra.mxu0 %v313
        %v695 = vpop.f32.mrf.mxu0
        %v696 = vadd.f32 0.0, %v695
        %697 = vmatmul.f32.gmra.mxu0 %v315
        %v698 = vpop.f32.mrf.mxu0
        %v699 = vadd.f32 0.0, %v698
        %700 = vmatmul.f32.gmra.mxu0 %v317
        %v701 = vpop.f32.mrf.mxu0
        %v702 = vadd.f32 0.0, %v701
        %703 = vmatmul.f32.gmra.mxu0 %v319
        %v704 = vpop.f32.mrf.mxu0
        %v705 = vadd.f32 0.0, %v704
        %706 = vmatmul.f32.gmra.mxu0 %v321
        %v707 = vpop.f32.mrf.mxu0
        %v708 = vadd.f32 0.0, %v707
        %709 = vmatmul.f32.gmra.mxu0 %v323
        %v710 = vpop.f32.mrf.mxu0
        %v711 = vadd.f32 0.0, %v710
        %712 = vmatmul.f32.gmra.mxu0 %v325
        %v713 = vpop.f32.mrf.mxu0
        %v714 = vadd.f32 0.0, %v713
        %715 = vmatmul.f32.gmra.mxu0 %v327
        %v716 = vpop.f32.mrf.mxu0
        %v717 = vadd.f32 0.0, %v716
        %718 = vmatmul.f32.gmra.mxu0 %v329
        %v719 = vpop.f32.mrf.mxu0
        %v720 = vadd.f32 0.0, %v719
        %721 = vmatmul.f32.gmra.mxu0 %v331
        %v722 = vpop.f32.mrf.mxu0
        %v723 = vadd.f32 0.0, %v722
        %724 = vmatmul.f32.gmra.mxu0 %v333
        %v725 = vpop.f32.mrf.mxu0
        %v726 = vadd.f32 0.0, %v725
        %727 = vmatmul.f32.gmra.mxu0 %v335
        %v728 = vpop.f32.mrf.mxu0
        %v729 = vadd.f32 0.0, %v728
        %730 = vmatmul.f32.gmra.mxu0 %v337
        %v731 = vpop.f32.mrf.mxu0
        %v732 = vadd.f32 0.0, %v731
        %733 = vmatmul.f32.gmra.mxu0 %v339
        %v734 = vpop.f32.mrf.mxu0
        %v735 = vadd.f32 0.0, %v734
        %736 = vmatmul.f32.gmra.mxu0 %v341
        %v737 = vpop.f32.mrf.mxu0
        %v738 = vadd.f32 0.0, %v737
        %739 = vmatmul.f32.gmra.mxu0 %v343
        %v740 = vpop.f32.mrf.mxu0
        %v741 = vadd.f32 0.0, %v740
        %742 = vmatmul.f32.gmra.mxu0 %v345
        %v743 = vpop.f32.mrf.mxu0
        %v744 = vadd.f32 0.0, %v743
        %745 = vmatmul.f32.gmra.mxu0 %v347
        %v746 = vpop.f32.mrf.mxu0
        %v747 = vadd.f32 0.0, %v746
        %748 = vmatmul.f32.gmra.mxu0 %v349
        %v749 = vpop.f32.mrf.mxu0
        %v750 = vadd.f32 0.0, %v749
        %751 = vmatmul.f32.gmra.mxu0 %v351
        %v752 = vpop.f32.mrf.mxu0
        %v753 = vadd.f32 0.0, %v752
        %754 = vmatmul.f32.gmra.mxu0 %v353
        %v755 = vpop.f32.mrf.mxu0
        %v756 = vadd.f32 0.0, %v755
        %757 = vmatmul.f32.gmra.mxu0 %v355
        %v758 = vpop.f32.mrf.mxu0
        %v759 = vadd.f32 0.0, %v758
        %760 = vmatmul.f32.gmra.mxu0 %v357
        %v761 = vpop.f32.mrf.mxu0
        %v762 = vadd.f32 0.0, %v761
        %763 = vmatmul.f32.gmra.mxu0 %v359
        %v764 = vpop.f32.mrf.mxu0
        %v765 = vadd.f32 0.0, %v764
        %766 = vmatmul.f32.gmra.mxu0 %v361
        %v767 = vpop.f32.mrf.mxu0
        %v768 = vadd.f32 0.0, %v767
        %769 = vmatmul.f32.gmra.mxu0 %v363
        %v770 = vpop.f32.mrf.mxu0
        %v771 = vadd.f32 0.0, %v770
        %772 = vmatmul.f32.gmra.mxu0 %v365
        %v773 = vpop.f32.mrf.mxu0
        %v774 = vadd.f32 0.0, %v773
        %775 = vmatmul.f32.gmra.mxu0 %v367
        %v776 = vpop.f32.mrf.mxu0
        %v777 = vadd.f32 0.0, %v776
        %778 = vmatmul.f32.gmra.mxu0 %v369
        %v779 = vpop.f32.mrf.mxu0
        %v780 = vadd.f32 0.0, %v779
        %781 = vmatmul.f32.gmra.mxu0 %v371
        %v782 = vpop.f32.mrf.mxu0
        %v783 = vadd.f32 0.0, %v782
        %784 = vmatmul.f32.gmra.mxu0 %v373
        %v785 = vpop.f32.mrf.mxu0
        %v786 = vadd.f32 0.0, %v785
        %787 = vmatmul.f32.gmra.mxu0 %v375
        %v788 = vpop.f32.mrf.mxu0
        %v789 = vadd.f32 0.0, %v788
        %790 = vmatmul.f32.gmra.mxu0 %v377
        %v791 = vpop.f32.mrf.mxu0
        %v792 = vadd.f32 0.0, %v791
        %793 = vmatmul.f32.gmra.mxu0 %v379
        %v794 = vpop.f32.mrf.mxu0
        %v795 = vadd.f32 0.0, %v794
        %796 = vmatmul.f32.gmra.mxu0 %v381
        %v797 = vpop.f32.mrf.mxu0
        %v798 = vadd.f32 0.0, %v797
        %799 = vmatmul.f32.gmra.mxu0 %v383
        %v800 = vpop.f32.mrf.mxu0
        %v801 = vadd.f32 0.0, %v800
        %802 = vmatmul.f32.gmra.mxu0 %v385
        %v803 = vpop.f32.mrf.mxu0
        %v804 = vadd.f32 0.0, %v803
        %805 = vmatmul.f32.gmra.mxu0 %v387
        %v806 = vpop.f32.mrf.mxu0
        %v807 = vadd.f32 0.0, %v806
        %808 = vmatmul.f32.gmra.mxu0 %v389
        %v809 = vpop.f32.mrf.mxu0
        %v810 = vadd.f32 0.0, %v809
        %811 = vmatmul.f32.gmra.mxu0 %v391
        %v812 = vpop.f32.mrf.mxu0
        %v813 = vadd.f32 0.0, %v812
        %814 = vmatmul.f32.gmra.mxu0 %v393
        %v815 = vpop.f32.mrf.mxu0
        %v816 = vadd.f32 0.0, %v815
        %817 = vmatmul.f32.gmra.mxu0 %v395
        %v818 = vpop.f32.mrf.mxu0
        %v819 = vadd.f32 0.0, %v818
        %820 = vmatmul.f32.gmra.mxu0 %v397
        %v821 = vpop.f32.mrf.mxu0
        %v822 = vadd.f32 0.0, %v821
        %823 = vmatmul.f32.gmra.mxu0 %v399
        %v824 = vpop.f32.mrf.mxu0
        %v825 = vadd.f32 0.0, %v824
        %826 = vmatmul.f32.gmra.mxu0 %v401
        %v827 = vpop.f32.mrf.mxu0
        %v828 = vadd.f32 0.0, %v827
        %829 = vmatmul.f32.gmra.mxu0 %v403
        %v830 = vpop.f32.mrf.mxu0
        %v831 = vadd.f32 0.0, %v830
        %832 = vmatmul.f32.gmra.mxu0 %v405
        %v833 = vpop.f32.mrf.mxu0
        %v834 = vadd.f32 0.0, %v833
        %835 = vdwg.mxu0
        %836 = vmatpush.msra.mxu0 0.0
        %837 = vmatpush.msra.mxu0 0.0
        %838 = vmatpush.msra.mxu0 0.0
        %839 = vmatpush.msra.mxu0 0.0
        %840 = vmatpush.msra.mxu0 0.0
        %841 = vmatpush.msra.mxu0 %v433
        %842 = vmatpush.msra.mxu0 %v432
        %843 = vmatpush.msra.mxu0 %v431
        %844 = vmatpush.msra.mxu0 %v430
        %845 = vmatpush.msra.mxu0 %v429
        %846 = vmatpush.msra.mxu0 %v428
        %847 = vmatpush.msra.mxu0 %v427
        %848 = vmatpush.msra.mxu0 %v426
        %849 = vmatpush.msra.mxu0 %v425
        %850 = vmatpush.msra.mxu0 %v424
        %851 = vmatpush.msra.mxu0 %v423
        %852 = vmatmul.f32.gmra.mxu0 %v436
        %v853 = vpop.f32.mrf.mxu0
        %v854 = vadd.f32 %v645, %v853
        %855 = vmatmul.f32.gmra.mxu0 %v439
        %v856 = vpop.f32.mrf.mxu0
        %v857 = vadd.f32 %v648, %v856
        %858 = vmatmul.f32.gmra.mxu0 %v442
        %v859 = vpop.f32.mrf.mxu0
        %v860 = vadd.f32 %v651, %v859
        %861 = vmatmul.f32.gmra.mxu0 %v445
        %v862 = vpop.f32.mrf.mxu0
        %v863 = vadd.f32 %v654, %v862
        %864 = vmatmul.f32.gmra.mxu0 %v448
        %v865 = vpop.f32.mrf.mxu0
        %v866 = vadd.f32 %v657, %v865
        %867 = vmatmul.f32.gmra.mxu0 %v451
        %v868 = vpop.f32.mrf.mxu0
        %v869 = vadd.f32 %v660, %v868
        %870 = vmatmul.f32.gmra.mxu0 %v454
        %v871 = vpop.f32.mrf.mxu0
        %v872 = vadd.f32 %v663, %v871
        %873 = vmatmul.f32.gmra.mxu0 %v457
        %v874 = vpop.f32.mrf.mxu0
        %v875 = vadd.f32 %v666, %v874
        %876 = vmatmul.f32.gmra.mxu0 %v460
        %v877 = vpop.f32.mrf.mxu0
        %v878 = vadd.f32 %v669, %v877
        %879 = vmatmul.f32.gmra.mxu0 %v463
        %v880 = vpop.f32.mrf.mxu0
        %v881 = vadd.f32 %v672, %v880
        %882 = vmatmul.f32.gmra.mxu0 %v466
        %v883 = vpop.f32.mrf.mxu0
        %v884 = vadd.f32 %v675, %v883
        %885 = vmatmul.f32.gmra.mxu0 %v469
        %v886 = vpop.f32.mrf.mxu0
        %v887 = vadd.f32 %v678, %v886
        %888 = vmatmul.f32.gmra.mxu0 %v472
        %v889 = vpop.f32.mrf.mxu0
        %v890 = vadd.f32 %v681, %v889
        %891 = vmatmul.f32.gmra.mxu0 %v475
        %v892 = vpop.f32.mrf.mxu0
        %v893 = vadd.f32 %v684, %v892
        %894 = vmatmul.f32.gmra.mxu0 %v478
        %v895 = vpop.f32.mrf.mxu0
        %v896 = vadd.f32 %v687, %v895
        %897 = vmatmul.f32.gmra.mxu0 %v481
        %v898 = vpop.f32.mrf.mxu0
        %v899 = vadd.f32 %v690, %v898
        %900 = vmatmul.f32.gmra.mxu0 %v484
        %v901 = vpop.f32.mrf.mxu0
        %v902 = vadd.f32 %v693, %v901
        %903 = vmatmul.f32.gmra.mxu0 %v487
        %v904 = vpop.f32.mrf.mxu0
        %v905 = vadd.f32 %v696, %v904
        %906 = vmatmul.f32.gmra.mxu0 %v490
        %v907 = vpop.f32.mrf.mxu0
        %v908 = vadd.f32 %v699, %v907
        %909 = vmatmul.f32.gmra.mxu0 %v493
        %v910 = vpop.f32.mrf.mxu0
        %v911 = vadd.f32 %v702, %v910
        %912 = vmatmul.f32.gmra.mxu0 %v496
        %v913 = vpop.f32.mrf.mxu0
        %v914 = vadd.f32 %v705, %v913
        %915 = vmatmul.f32.gmra.mxu0 %v499
        %v916 = vpop.f32.mrf.mxu0
        %v917 = vadd.f32 %v708, %v916
        %918 = vmatmul.f32.gmra.mxu0 %v502
        %v919 = vpop.f32.mrf.mxu0
        %v920 = vadd.f32 %v711, %v919
        %921 = vmatmul.f32.gmra.mxu0 %v505
        %v922 = vpop.f32.mrf.mxu0
        %v923 = vadd.f32 %v714, %v922
        %924 = vmatmul.f32.gmra.mxu0 %v508
        %v925 = vpop.f32.mrf.mxu0
        %v926 = vadd.f32 %v717, %v925
        %927 = vmatmul.f32.gmra.mxu0 %v511
        %v928 = vpop.f32.mrf.mxu0
        %v929 = vadd.f32 %v720, %v928
        %930 = vmatmul.f32.gmra.mxu0 %v514
        %v931 = vpop.f32.mrf.mxu0
        %v932 = vadd.f32 %v723, %v931
        %933 = vmatmul.f32.gmra.mxu0 %v517
        %v934 = vpop.f32.mrf.mxu0
        %v935 = vadd.f32 %v726, %v934
        %936 = vmatmul.f32.gmra.mxu0 %v520
        %v937 = vpop.f32.mrf.mxu0
        %v938 = vadd.f32 %v729, %v937
        %939 = vmatmul.f32.gmra.mxu0 %v523
        %v940 = vpop.f32.mrf.mxu0
        %v941 = vadd.f32 %v732, %v940
        %942 = vmatmul.f32.gmra.mxu0 %v526
        %v943 = vpop.f32.mrf.mxu0
        %v944 = vadd.f32 %v735, %v943
        %945 = vmatmul.f32.gmra.mxu0 %v529
        %v946 = vpop.f32.mrf.mxu0
        %v947 = vadd.f32 %v738, %v946
        %948 = vmatmul.f32.gmra.mxu0 %v532
        %v949 = vpop.f32.mrf.mxu0
        %v950 = vadd.f32 %v741, %v949
        %951 = vmatmul.f32.gmra.mxu0 %v535
        %v952 = vpop.f32.mrf.mxu0
        %v953 = vadd.f32 %v744, %v952
        %954 = vmatmul.f32.gmra.mxu0 %v538
        %v955 = vpop.f32.mrf.mxu0
        %v956 = vadd.f32 %v747, %v955
        %957 = vmatmul.f32.gmra.mxu0 %v541
        %v958 = vpop.f32.mrf.mxu0
        %v959 = vadd.f32 %v750, %v958
        %960 = vmatmul.f32.gmra.mxu0 %v544
        %v961 = vpop.f32.mrf.mxu0
        %v962 = vadd.f32 %v753, %v961
        %963 = vmatmul.f32.gmra.mxu0 %v547
        %v964 = vpop.f32.mrf.mxu0
        %v965 = vadd.f32 %v756, %v964
        %966 = vmatmul.f32.gmra.mxu0 %v550
        %v967 = vpop.f32.mrf.mxu0
        %v968 = vadd.f32 %v759, %v967
        %969 = vmatmul.f32.gmra.mxu0 %v553
        %v970 = vpop.f32.mrf.mxu0
        %v971 = vadd.f32 %v762, %v970
        %972 = vmatmul.f32.gmra.mxu0 %v556
        %v973 = vpop.f32.mrf.mxu0
        %v974 = vadd.f32 %v765, %v973
        %975 = vmatmul.f32.gmra.mxu0 %v559
        %v976 = vpop.f32.mrf.mxu0
        %v977 = vadd.f32 %v768, %v976
        %978 = vmatmul.f32.gmra.mxu0 %v562
        %v979 = vpop.f32.mrf.mxu0
        %v980 = vadd.f32 %v771, %v979
        %981 = vmatmul.f32.gmra.mxu0 %v565
        %v982 = vpop.f32.mrf.mxu0
        %v983 = vadd.f32 %v774, %v982
        %984 = vmatmul.f32.gmra.mxu0 %v568
        %v985 = vpop.f32.mrf.mxu0
        %v986 = vadd.f32 %v777, %v985
        %987 = vmatmul.f32.gmra.mxu0 %v571
        %v988 = vpop.f32.mrf.mxu0
        %v989 = vadd.f32 %v780, %v988
        %990 = vmatmul.f32.gmra.mxu0 %v574
        %v991 = vpop.f32.mrf.mxu0
        %v992 = vadd.f32 %v783, %v991
        %993 = vmatmul.f32.gmra.mxu0 %v577
        %v994 = vpop.f32.mrf.mxu0
        %v995 = vadd.f32 %v786, %v994
        %996 = vmatmul.f32.gmra.mxu0 %v580
        %v997 = vpop.f32.mrf.mxu0
        %v998 = vadd.f32 %v789, %v997
        %999 = vmatmul.f32.gmra.mxu0 %v583
        %v1000 = vpop.f32.mrf.mxu0
        %v1001 = vadd.f32 %v792, %v1000
        %1002 = vmatmul.f32.gmra.mxu0 %v586
        %v1003 = vpop.f32.mrf.mxu0
        %v1004 = vadd.f32 %v795, %v1003
        %1005 = vmatmul.f32.gmra.mxu0 %v589
        %v1006 = vpop.f32.mrf.mxu0
        %v1007 = vadd.f32 %v798, %v1006
        %1008 = vmatmul.f32.gmra.mxu0 %v592
        %v1009 = vpop.f32.mrf.mxu0
        %v1010 = vadd.f32 %v801, %v1009
        %1011 = vmatmul.f32.gmra.mxu0 %v595
        %v1012 = vpop.f32.mrf.mxu0
        %v1013 = vadd.f32 %v804, %v1012
        %1014 = vmatmul.f32.gmra.mxu0 %v598
        %v1015 = vpop.f32.mrf.mxu0
        %v1016 = vadd.f32 %v807, %v1015
        %1017 = vmatmul.f32.gmra.mxu0 %v601
        %v1018 = vpop.f32.mrf.mxu0
        %v1019 = vadd.f32 %v810, %v1018
        %1020 = vmatmul.f32.gmra.mxu0 %v604
        %v1021 = vpop.f32.mrf.mxu0
        %v1022 = vadd.f32 %v813, %v1021
        %1023 = vmatmul.f32.gmra.mxu0 %v607
        %v1024 = vpop.f32.mrf.mxu0
        %v1025 = vadd.f32 %v816, %v1024
        %1026 = vmatmul.f32.gmra.mxu0 %v610
        %v1027 = vpop.f32.mrf.mxu0
        %v1028 = vadd.f32 %v819, %v1027
        %1029 = vmatmul.f32.gmra.mxu0 %v613
        %v1030 = vpop.f32.mrf.mxu0
        %v1031 = vadd.f32 %v822, %v1030
        %1032 = vmatmul.f32.gmra.mxu0 %v616
        %v1033 = vpop.f32.mrf.mxu0
        %v1034 = vadd.f32 %v825, %v1033
        %1035 = vmatmul.f32.gmra.mxu0 %v619
        %v1036 = vpop.f32.mrf.mxu0
        %v1037 = vadd.f32 %v828, %v1036
        %1038 = vmatmul.f32.gmra.mxu0 %v622
        %v1039 = vpop.f32.mrf.mxu0
        %v1040 = vadd.f32 %v831, %v1039
        %1041 = vmatmul.f32.gmra.mxu0 %v625
        %v1042 = vpop.f32.mrf.mxu0
        %v1043 = vadd.f32 %v834, %v1042
        %1044 = vdwg.mxu0
        %v1045 = vld [vmem:[%s2] sm:$0x1]
        %v1047 = vperm.slane %v1045, 0
        %v1049 = vmul.f32 %v854, %v1047
        %v1050 = vmul.f32 %v857, %v1047
        %v1051 = vmul.f32 %v860, %v1047
        %v1052 = vmul.f32 %v863, %v1047
        %v1053 = vmul.f32 %v866, %v1047
        %v1054 = vmul.f32 %v869, %v1047
        %v1055 = vmul.f32 %v872, %v1047
        %v1056 = vmul.f32 %v875, %v1047
        %v1057 = vmul.f32 %v878, %v1047
        %v1058 = vmul.f32 %v881, %v1047
        %v1059 = vmul.f32 %v884, %v1047
        %v1060 = vmul.f32 %v887, %v1047
        %v1061 = vmul.f32 %v890, %v1047
        %v1062 = vmul.f32 %v893, %v1047
        %v1063 = vmul.f32 %v896, %v1047
        %v1064 = vmul.f32 %v899, %v1047
        %v1065 = vmul.f32 %v902, %v1047
        %v1066 = vmul.f32 %v905, %v1047
        %v1067 = vmul.f32 %v908, %v1047
        %v1068 = vmul.f32 %v911, %v1047
        %v1069 = vmul.f32 %v914, %v1047
        %v1070 = vmul.f32 %v917, %v1047
        %v1071 = vmul.f32 %v920, %v1047
        %v1072 = vmul.f32 %v923, %v1047
        %v1073 = vmul.f32 %v926, %v1047
        %v1074 = vmul.f32 %v929, %v1047
        %v1075 = vmul.f32 %v932, %v1047
        %v1076 = vmul.f32 %v935, %v1047
        %v1077 = vmul.f32 %v938, %v1047
        %v1078 = vmul.f32 %v941, %v1047
        %v1079 = vmul.f32 %v944, %v1047
        %v1080 = vmul.f32 %v947, %v1047
        %v1081 = vmul.f32 %v950, %v1047
        %v1082 = vmul.f32 %v953, %v1047
        %v1083 = vmul.f32 %v956, %v1047
        %v1084 = vmul.f32 %v959, %v1047
        %v1085 = vmul.f32 %v962, %v1047
        %v1086 = vmul.f32 %v965, %v1047
        %v1087 = vmul.f32 %v968, %v1047
        %v1088 = vmul.f32 %v971, %v1047
        %v1089 = vmul.f32 %v974, %v1047
        %v1090 = vmul.f32 %v977, %v1047
        %v1091 = vmul.f32 %v980, %v1047
        %v1092 = vmul.f32 %v983, %v1047
        %v1093 = vmul.f32 %v986, %v1047
        %v1094 = vmul.f32 %v989, %v1047
        %v1095 = vmul.f32 %v992, %v1047
        %v1096 = vmul.f32 %v995, %v1047
        %v1097 = vmul.f32 %v998, %v1047
        %v1098 = vmul.f32 %v1001, %v1047
        %v1099 = vmul.f32 %v1004, %v1047
        %v1100 = vmul.f32 %v1007, %v1047
        %v1101 = vmul.f32 %v1010, %v1047
        %v1102 = vmul.f32 %v1013, %v1047
        %v1103 = vmul.f32 %v1016, %v1047
        %v1104 = vmul.f32 %v1019, %v1047
        %v1105 = vmul.f32 %v1022, %v1047
        %v1106 = vmul.f32 %v1025, %v1047
        %v1107 = vmul.f32 %v1028, %v1047
        %v1108 = vmul.f32 %v1031, %v1047
        %v1109 = vmul.f32 %v1034, %v1047
        %v1110 = vmul.f32 %v1037, %v1047
        %v1111 = vmul.f32 %v1040, %v1047
        %v1112 = vmul.f32 %v1043, %v1047
        %v1113 = vld [vmem:[%s3] sm:$0x1]
        %v1115 = vperm.slane %v1113, 0
        %v1117 = vadd.f32 %v1049, %v1115
        %v1118 = vadd.f32 %v1050, %v1115
        %v1119 = vadd.f32 %v1051, %v1115
        %v1120 = vadd.f32 %v1052, %v1115
        %v1121 = vadd.f32 %v1053, %v1115
        %v1122 = vadd.f32 %v1054, %v1115
        %v1123 = vadd.f32 %v1055, %v1115
        %v1124 = vadd.f32 %v1056, %v1115
        %v1125 = vadd.f32 %v1057, %v1115
        %v1126 = vadd.f32 %v1058, %v1115
        %v1127 = vadd.f32 %v1059, %v1115
        %v1128 = vadd.f32 %v1060, %v1115
        %v1129 = vadd.f32 %v1061, %v1115
        %v1130 = vadd.f32 %v1062, %v1115
        %v1131 = vadd.f32 %v1063, %v1115
        %v1132 = vadd.f32 %v1064, %v1115
        %v1133 = vadd.f32 %v1065, %v1115
        %v1134 = vadd.f32 %v1066, %v1115
        %v1135 = vadd.f32 %v1067, %v1115
        %v1136 = vadd.f32 %v1068, %v1115
        %v1137 = vadd.f32 %v1069, %v1115
        %v1138 = vadd.f32 %v1070, %v1115
        %v1139 = vadd.f32 %v1071, %v1115
        %v1140 = vadd.f32 %v1072, %v1115
        %v1141 = vadd.f32 %v1073, %v1115
        %v1142 = vadd.f32 %v1074, %v1115
        %v1143 = vadd.f32 %v1075, %v1115
        %v1144 = vadd.f32 %v1076, %v1115
        %v1145 = vadd.f32 %v1077, %v1115
        %v1146 = vadd.f32 %v1078, %v1115
        %v1147 = vadd.f32 %v1079, %v1115
        %v1148 = vadd.f32 %v1080, %v1115
        %v1149 = vadd.f32 %v1081, %v1115
        %v1150 = vadd.f32 %v1082, %v1115
        %v1151 = vadd.f32 %v1083, %v1115
        %v1152 = vadd.f32 %v1084, %v1115
        %v1153 = vadd.f32 %v1085, %v1115
        %v1154 = vadd.f32 %v1086, %v1115
        %v1155 = vadd.f32 %v1087, %v1115
        %v1156 = vadd.f32 %v1088, %v1115
        %v1157 = vadd.f32 %v1089, %v1115
        %v1158 = vadd.f32 %v1090, %v1115
        %v1159 = vadd.f32 %v1091, %v1115
        %v1160 = vadd.f32 %v1092, %v1115
        %v1161 = vadd.f32 %v1093, %v1115
        %v1162 = vadd.f32 %v1094, %v1115
        %v1163 = vadd.f32 %v1095, %v1115
        %v1164 = vadd.f32 %v1096, %v1115
        %v1165 = vadd.f32 %v1097, %v1115
        %v1166 = vadd.f32 %v1098, %v1115
        %v1167 = vadd.f32 %v1099, %v1115
        %v1168 = vadd.f32 %v1100, %v1115
        %v1169 = vadd.f32 %v1101, %v1115
        %v1170 = vadd.f32 %v1102, %v1115
        %v1171 = vadd.f32 %v1103, %v1115
        %v1172 = vadd.f32 %v1104, %v1115
        %v1173 = vadd.f32 %v1105, %v1115
        %v1174 = vadd.f32 %v1106, %v1115
        %v1175 = vadd.f32 %v1107, %v1115
        %v1176 = vadd.f32 %v1108, %v1115
        %v1177 = vadd.f32 %v1109, %v1115
        %v1178 = vadd.f32 %v1110, %v1115
        %v1179 = vadd.f32 %v1111, %v1115
        %v1180 = vadd.f32 %v1112, %v1115
        %v1181 = vld [vmem:[%s276] sm:$0xff]
        %v1182 = vld [vmem:[%s276 + $0x8] sm:$0xff]
        %v1183 = vld [vmem:[%s276 + $0x10] sm:$0xff]
        %v1184 = vld [vmem:[%s276 + $0x18] sm:$0xff]
        %v1185 = vld [vmem:[%s276 + $0x20] sm:$0xff]
        %v1186 = vld [vmem:[%s276 + $0x28] sm:$0xff]
        %v1187 = vld [vmem:[%s276 + $0x30] sm:$0xff]
        %v1188 = vld [vmem:[%s276 + $0x38] sm:$0xff]
        %v1189 = vld [vmem:[%s276 + $0x40] sm:$0xff]
        %v1190 = vld [vmem:[%s276 + $0x48] sm:$0xff]
        %v1191 = vld [vmem:[%s276 + $0x50] sm:$0xff]
        %v1192 = vld [vmem:[%s276 + $0x58] sm:$0xff]
        %v1193 = vld [vmem:[%s276 + $0x60] sm:$0xff]
        %v1194 = vld [vmem:[%s276 + $0x68] sm:$0xff]
        %v1195 = vld [vmem:[%s276 + $0x70] sm:$0xff]
        %v1196 = vld [vmem:[%s276 + $0x78] sm:$0xff]
        %v1197 = vld [vmem:[%s276 + $0x80] sm:$0xff]
        %v1198 = vld [vmem:[%s276 + $0x88] sm:$0xff]
        %v1199 = vld [vmem:[%s276 + $0x90] sm:$0xff]
        %v1200 = vld [vmem:[%s276 + $0x98] sm:$0xff]
        %v1201 = vld [vmem:[%s276 + $0xa0] sm:$0xff]
        %v1202 = vld [vmem:[%s276 + $0xa8] sm:$0xff]
        %v1203 = vld [vmem:[%s276 + $0xb0] sm:$0xff]
        %v1204 = vld [vmem:[%s276 + $0xb8] sm:$0xff]
        %v1205 = vld [vmem:[%s276 + $0xc0] sm:$0xff]
        %v1206 = vld [vmem:[%s276 + $0xc8] sm:$0xff]
        %v1207 = vld [vmem:[%s276 + $0xd0] sm:$0xff]
        %v1208 = vld [vmem:[%s276 + $0xd8] sm:$0xff]
        %v1209 = vld [vmem:[%s276 + $0xe0] sm:$0xff]
        %v1210 = vld [vmem:[%s276 + $0xe8] sm:$0xff]
        %v1211 = vld [vmem:[%s276 + $0xf0] sm:$0xff]
        %v1212 = vld [vmem:[%s276 + $0xf8] sm:$0xff]
        %v1213 = vld [vmem:[%s276 + $0x100] sm:$0xff]
        %v1214 = vld [vmem:[%s276 + $0x108] sm:$0xff]
        %v1215 = vld [vmem:[%s276 + $0x110] sm:$0xff]
        %v1216 = vld [vmem:[%s276 + $0x118] sm:$0xff]
        %v1217 = vld [vmem:[%s276 + $0x120] sm:$0xff]
        %v1218 = vld [vmem:[%s276 + $0x128] sm:$0xff]
        %v1219 = vld [vmem:[%s276 + $0x130] sm:$0xff]
        %v1220 = vld [vmem:[%s276 + $0x138] sm:$0xff]
        %v1221 = vld [vmem:[%s276 + $0x140] sm:$0xff]
        %v1222 = vld [vmem:[%s276 + $0x148] sm:$0xff]
        %v1223 = vld [vmem:[%s276 + $0x150] sm:$0xff]
        %v1224 = vld [vmem:[%s276 + $0x158] sm:$0xff]
        %v1225 = vld [vmem:[%s276 + $0x160] sm:$0xff]
        %v1226 = vld [vmem:[%s276 + $0x168] sm:$0xff]
        %v1227 = vld [vmem:[%s276 + $0x170] sm:$0xff]
        %v1228 = vld [vmem:[%s276 + $0x178] sm:$0xff]
        %v1229 = vld [vmem:[%s276 + $0x180] sm:$0xff]
        %v1230 = vld [vmem:[%s276 + $0x188] sm:$0xff]
        %v1231 = vld [vmem:[%s276 + $0x190] sm:$0xff]
        %v1232 = vld [vmem:[%s276 + $0x198] sm:$0xff]
        %v1233 = vld [vmem:[%s276 + $0x1a0] sm:$0xff]
        %v1234 = vld [vmem:[%s276 + $0x1a8] sm:$0xff]
        %v1235 = vld [vmem:[%s276 + $0x1b0] sm:$0xff]
        %v1236 = vld [vmem:[%s276 + $0x1b8] sm:$0xff]
        %v1237 = vld [vmem:[%s276 + $0x1c0] sm:$0xff]
        %v1238 = vld [vmem:[%s276 + $0x1c8] sm:$0xff]
        %v1239 = vld [vmem:[%s276 + $0x1d0] sm:$0xff]
        %v1240 = vld [vmem:[%s276 + $0x1d8] sm:$0xff]
        %v1241 = vld [vmem:[%s276 + $0x1e0] sm:$0xff]
        %v1242 = vld [vmem:[%s276 + $0x1e8] sm:$0xff]
        %v1243 = vld [vmem:[%s276 + $0x1f0] sm:$0xff]
        %v1244 = vld [vmem:[%s276 + $0x1f8] sm:$0xff]
        %v1245 = vadd.f32 %v1117, %v1181
        %v1246 = vadd.f32 %v1118, %v1182
        %v1247 = vadd.f32 %v1119, %v1183
        %v1248 = vadd.f32 %v1120, %v1184
        %v1249 = vadd.f32 %v1121, %v1185
        %v1250 = vadd.f32 %v1122, %v1186
        %v1251 = vadd.f32 %v1123, %v1187
        %v1252 = vadd.f32 %v1124, %v1188
        %v1253 = vadd.f32 %v1125, %v1189
        %v1254 = vadd.f32 %v1126, %v1190
        %v1255 = vadd.f32 %v1127, %v1191
        %v1256 = vadd.f32 %v1128, %v1192
        %v1257 = vadd.f32 %v1129, %v1193
        %v1258 = vadd.f32 %v1130, %v1194
        %v1259 = vadd.f32 %v1131, %v1195
        %v1260 = vadd.f32 %v1132, %v1196
        %v1261 = vadd.f32 %v1133, %v1197
        %v1262 = vadd.f32 %v1134, %v1198
        %v1263 = vadd.f32 %v1135, %v1199
        %v1264 = vadd.f32 %v1136, %v1200
        %v1265 = vadd.f32 %v1137, %v1201
        %v1266 = vadd.f32 %v1138, %v1202
        %v1267 = vadd.f32 %v1139, %v1203
        %v1268 = vadd.f32 %v1140, %v1204
        %v1269 = vadd.f32 %v1141, %v1205
        %v1270 = vadd.f32 %v1142, %v1206
        %v1271 = vadd.f32 %v1143, %v1207
        %v1272 = vadd.f32 %v1144, %v1208
        %v1273 = vadd.f32 %v1145, %v1209
        %v1274 = vadd.f32 %v1146, %v1210
        %v1275 = vadd.f32 %v1147, %v1211
        %v1276 = vadd.f32 %v1148, %v1212
        %v1277 = vadd.f32 %v1149, %v1213
        %v1278 = vadd.f32 %v1150, %v1214
        %v1279 = vadd.f32 %v1151, %v1215
        %v1280 = vadd.f32 %v1152, %v1216
        %v1281 = vadd.f32 %v1153, %v1217
        %v1282 = vadd.f32 %v1154, %v1218
        %v1283 = vadd.f32 %v1155, %v1219
        %v1284 = vadd.f32 %v1156, %v1220
        %v1285 = vadd.f32 %v1157, %v1221
        %v1286 = vadd.f32 %v1158, %v1222
        %v1287 = vadd.f32 %v1159, %v1223
        %v1288 = vadd.f32 %v1160, %v1224
        %v1289 = vadd.f32 %v1161, %v1225
        %v1290 = vadd.f32 %v1162, %v1226
        %v1291 = vadd.f32 %v1163, %v1227
        %v1292 = vadd.f32 %v1164, %v1228
        %v1293 = vadd.f32 %v1165, %v1229
        %v1294 = vadd.f32 %v1166, %v1230
        %v1295 = vadd.f32 %v1167, %v1231
        %v1296 = vadd.f32 %v1168, %v1232
        %v1297 = vadd.f32 %v1169, %v1233
        %v1298 = vadd.f32 %v1170, %v1234
        %v1299 = vadd.f32 %v1171, %v1235
        %v1300 = vadd.f32 %v1172, %v1236
        %v1301 = vadd.f32 %v1173, %v1237
        %v1302 = vadd.f32 %v1174, %v1238
        %v1303 = vadd.f32 %v1175, %v1239
        %v1304 = vadd.f32 %v1176, %v1240
        %v1305 = vadd.f32 %v1177, %v1241
        %v1306 = vadd.f32 %v1178, %v1242
        %v1307 = vadd.f32 %v1179, %v1243
        %v1308 = vadd.f32 %v1180, %v1244
        %v1309 = vmax.f32 %v1245, 0.0
        %v1310 = vmax.f32 %v1246, 0.0
        %v1311 = vmax.f32 %v1247, 0.0
        %v1312 = vmax.f32 %v1248, 0.0
        %v1313 = vmax.f32 %v1249, 0.0
        %v1314 = vmax.f32 %v1250, 0.0
        %v1315 = vmax.f32 %v1251, 0.0
        %v1316 = vmax.f32 %v1252, 0.0
        %v1317 = vmax.f32 %v1253, 0.0
        %v1318 = vmax.f32 %v1254, 0.0
        %v1319 = vmax.f32 %v1255, 0.0
        %v1320 = vmax.f32 %v1256, 0.0
        %v1321 = vmax.f32 %v1257, 0.0
        %v1322 = vmax.f32 %v1258, 0.0
        %v1323 = vmax.f32 %v1259, 0.0
        %v1324 = vmax.f32 %v1260, 0.0
        %v1325 = vmax.f32 %v1261, 0.0
        %v1326 = vmax.f32 %v1262, 0.0
        %v1327 = vmax.f32 %v1263, 0.0
        %v1328 = vmax.f32 %v1264, 0.0
        %v1329 = vmax.f32 %v1265, 0.0
        %v1330 = vmax.f32 %v1266, 0.0
        %v1331 = vmax.f32 %v1267, 0.0
        %v1332 = vmax.f32 %v1268, 0.0
        %v1333 = vmax.f32 %v1269, 0.0
        %v1334 = vmax.f32 %v1270, 0.0
        %v1335 = vmax.f32 %v1271, 0.0
        %v1336 = vmax.f32 %v1272, 0.0
        %v1337 = vmax.f32 %v1273, 0.0
        %v1338 = vmax.f32 %v1274, 0.0
        %v1339 = vmax.f32 %v1275, 0.0
        %v1340 = vmax.f32 %v1276, 0.0
        %v1341 = vmax.f32 %v1277, 0.0
        %v1342 = vmax.f32 %v1278, 0.0
        %v1343 = vmax.f32 %v1279, 0.0
        %v1344 = vmax.f32 %v1280, 0.0
        %v1345 = vmax.f32 %v1281, 0.0
        %v1346 = vmax.f32 %v1282, 0.0
        %v1347 = vmax.f32 %v1283, 0.0
        %v1348 = vmax.f32 %v1284, 0.0
        %v1349 = vmax.f32 %v1285, 0.0
        %v1350 = vmax.f32 %v1286, 0.0
        %v1351 = vmax.f32 %v1287, 0.0
        %v1352 = vmax.f32 %v1288, 0.0
        %v1353 = vmax.f32 %v1289, 0.0
        %v1354 = vmax.f32 %v1290, 0.0
        %v1355 = vmax.f32 %v1291, 0.0
        %v1356 = vmax.f32 %v1292, 0.0
        %v1357 = vmax.f32 %v1293, 0.0
        %v1358 = vmax.f32 %v1294, 0.0
        %v1359 = vmax.f32 %v1295, 0.0
        %v1360 = vmax.f32 %v1296, 0.0
        %v1361 = vmax.f32 %v1297, 0.0
        %v1362 = vmax.f32 %v1298, 0.0
        %v1363 = vmax.f32 %v1299, 0.0
        %v1364 = vmax.f32 %v1300, 0.0
        %v1365 = vmax.f32 %v1301, 0.0
        %v1366 = vmax.f32 %v1302, 0.0
        %v1367 = vmax.f32 %v1303, 0.0
        %v1368 = vmax.f32 %v1304, 0.0
        %v1369 = vmax.f32 %v1305, 0.0
        %v1370 = vmax.f32 %v1306, 0.0
        %v1371 = vmax.f32 %v1307, 0.0
        %v1372 = vmax.f32 %v1308, 0.0
        %vm1373 = vcmask 64512
        %1374 = vst.msk [vmem:[%s259] sm:$0xff] %vm1373, %v1309
        %1375 = vst.msk [vmem:[%s259 + $0x8] sm:$0xff] %vm1373, %v1310
        %1376 = vst.msk [vmem:[%s259 + $0x10] sm:$0xff] %vm1373, %v1311
        %1377 = vst.msk [vmem:[%s259 + $0x18] sm:$0xff] %vm1373, %v1312
        %1378 = vst.msk [vmem:[%s259 + $0x20] sm:$0xff] %vm1373, %v1313
        %1379 = vst.msk [vmem:[%s259 + $0x28] sm:$0xff] %vm1373, %v1314
        %1380 = vst.msk [vmem:[%s259 + $0x30] sm:$0xff] %vm1373, %v1315
        %1381 = vst.msk [vmem:[%s259 + $0x38] sm:$0xff] %vm1373, %v1316
        %1382 = vst.msk [vmem:[%s259 + $0x40] sm:$0xff] %vm1373, %v1317
        %1383 = vst.msk [vmem:[%s259 + $0x48] sm:$0xff] %vm1373, %v1318
        %1384 = vst.msk [vmem:[%s259 + $0x50] sm:$0xff] %vm1373, %v1319
        %1385 = vst.msk [vmem:[%s259 + $0x58] sm:$0xff] %vm1373, %v1320
        %1386 = vst.msk [vmem:[%s259 + $0x60] sm:$0xff] %vm1373, %v1321
        %1387 = vst.msk [vmem:[%s259 + $0x68] sm:$0xff] %vm1373, %v1322
        %1388 = vst.msk [vmem:[%s259 + $0x70] sm:$0xff] %vm1373, %v1323
        %1389 = vst.msk [vmem:[%s259 + $0x78] sm:$0xff] %vm1373, %v1324
        %1390 = vst.msk [vmem:[%s259 + $0x80] sm:$0xff] %vm1373, %v1325
        %1391 = vst.msk [vmem:[%s259 + $0x88] sm:$0xff] %vm1373, %v1326
        %1392 = vst.msk [vmem:[%s259 + $0x90] sm:$0xff] %vm1373, %v1327
        %1393 = vst.msk [vmem:[%s259 + $0x98] sm:$0xff] %vm1373, %v1328
        %1394 = vst.msk [vmem:[%s259 + $0xa0] sm:$0xff] %vm1373, %v1329
        %1395 = vst.msk [vmem:[%s259 + $0xa8] sm:$0xff] %vm1373, %v1330
        %1396 = vst.msk [vmem:[%s259 + $0xb0] sm:$0xff] %vm1373, %v1331
        %1397 = vst.msk [vmem:[%s259 + $0xb8] sm:$0xff] %vm1373, %v1332
        %1398 = vst.msk [vmem:[%s259 + $0xc0] sm:$0xff] %vm1373, %v1333
        %1399 = vst.msk [vmem:[%s259 + $0xc8] sm:$0xff] %vm1373, %v1334
        %1400 = vst.msk [vmem:[%s259 + $0xd0] sm:$0xff] %vm1373, %v1335
        %1401 = vst.msk [vmem:[%s259 + $0xd8] sm:$0xff] %vm1373, %v1336
        %1402 = vst.msk [vmem:[%s259 + $0xe0] sm:$0xff] %vm1373, %v1337
        %1403 = vst.msk [vmem:[%s259 + $0xe8] sm:$0xff] %vm1373, %v1338
        %1404 = vst.msk [vmem:[%s259 + $0xf0] sm:$0xff] %vm1373, %v1339
        %1405 = vst.msk [vmem:[%s259 + $0xf8] sm:$0xff] %vm1373, %v1340
        %1406 = vst.msk [vmem:[%s259 + $0x100] sm:$0xff] %vm1373, %v1341
        %1407 = vst.msk [vmem:[%s259 + $0x108] sm:$0xff] %vm1373, %v1342
        %1408 = vst.msk [vmem:[%s259 + $0x110] sm:$0xff] %vm1373, %v1343
        %1409 = vst.msk [vmem:[%s259 + $0x118] sm:$0xff] %vm1373, %v1344
        %1410 = vst.msk [vmem:[%s259 + $0x120] sm:$0xff] %vm1373, %v1345
        %1411 = vst.msk [vmem:[%s259 + $0x128] sm:$0xff] %vm1373, %v1346
        %1412 = vst.msk [vmem:[%s259 + $0x130] sm:$0xff] %vm1373, %v1347
        %1413 = vst.msk [vmem:[%s259 + $0x138] sm:$0xff] %vm1373, %v1348
        %1414 = vst.msk [vmem:[%s259 + $0x140] sm:$0xff] %vm1373, %v1349
        %1415 = vst.msk [vmem:[%s259 + $0x148] sm:$0xff] %vm1373, %v1350
        %1416 = vst.msk [vmem:[%s259 + $0x150] sm:$0xff] %vm1373, %v1351
        %1417 = vst.msk [vmem:[%s259 + $0x158] sm:$0xff] %vm1373, %v1352
        %1418 = vst.msk [vmem:[%s259 + $0x160] sm:$0xff] %vm1373, %v1353
        %1419 = vst.msk [vmem:[%s259 + $0x168] sm:$0xff] %vm1373, %v1354
        %1420 = vst.msk [vmem:[%s259 + $0x170] sm:$0xff] %vm1373, %v1355
        %1421 = vst.msk [vmem:[%s259 + $0x178] sm:$0xff] %vm1373, %v1356
        %1422 = vst.msk [vmem:[%s259 + $0x180] sm:$0xff] %vm1373, %v1357
        %1423 = vst.msk [vmem:[%s259 + $0x188] sm:$0xff] %vm1373, %v1358
        %1424 = vst.msk [vmem:[%s259 + $0x190] sm:$0xff] %vm1373, %v1359
        %1425 = vst.msk [vmem:[%s259 + $0x198] sm:$0xff] %vm1373, %v1360
        %1426 = vst.msk [vmem:[%s259 + $0x1a0] sm:$0xff] %vm1373, %v1361
        %1427 = vst.msk [vmem:[%s259 + $0x1a8] sm:$0xff] %vm1373, %v1362
        %1428 = vst.msk [vmem:[%s259 + $0x1b0] sm:$0xff] %vm1373, %v1363
        %1429 = vst.msk [vmem:[%s259 + $0x1b8] sm:$0xff] %vm1373, %v1364
        %1430 = vst.msk [vmem:[%s259 + $0x1c0] sm:$0xff] %vm1373, %v1365
        %1431 = vst.msk [vmem:[%s259 + $0x1c8] sm:$0xff] %vm1373, %v1366
        %1432 = vst.msk [vmem:[%s259 + $0x1d0] sm:$0xff] %vm1373, %v1367
        %1433 = vst.msk [vmem:[%s259 + $0x1d8] sm:$0xff] %vm1373, %v1368
        %1434 = vst.msk [vmem:[%s259 + $0x1e0] sm:$0xff] %vm1373, %v1369
        %1435 = vst.msk [vmem:[%s259 + $0x1e8] sm:$0xff] %vm1373, %v1370
        %1436 = vst.msk [vmem:[%s259 + $0x1f0] sm:$0xff] %vm1373, %v1371
        %1437 = vst.msk [vmem:[%s259 + $0x1f8] sm:$0xff] %vm1373, %v1372
        %s1438 = sand.u32 %s156, 1
        %s1439 = scalar_lea.sflag [#allocation3], %s1438
        %s1440 = sand.u32 %s156, 1
        %s1441 = smul.addr %s1440, 512
        %s1442 = scalar_lea.vmem [#allocation2], %s1441
        // Predicated region
        $region41: #{basic_block3d_v2.3} parent=39 // pred_check
          %p1443 = pneg %p166
        $region42: #{basic_block3d_v2.3} parent=39 // pred_check_branch
          %1445 = sbr.rel (%p1443) target = $region44
        $region43: #{basic_block3d_v2.3} parent=39 // pred_region
          %s1446 = smul.u32 64, %s23
          %1448 = vsyncadd %s1439, 0
          %s1449 = smul.addr %s1446, 8
          %s1450 = scalar_lea.hbm %s5, %s1449
          %s1451 = sshll.u32 %s1442, 4
          %s1452 = int_to_ptr.vmem [resolvable:$true] %s1451
          %s1453 = sshll.u32 %s1450, 4
          %s1454 = int_to_ptr.hbm [resolvable:$true] %s1453
          %1459 = dma.vmem_to_hbm [thread:$0]  %s1452, 8192, %s1454, %s1439, 128, 128, 8
        $region44: #{basic_block3d_v2.3} parent=39 // pred_fallthru
          _
      $region40: #{basic_block3d_v2.3} parent=5 // pred_fallthru
        _
      %p1460 = scmp.le.s32.totalorder 2, %s14
      // Predicated region
      $region45: #{basic_block3d_v2.3} parent=5 // pred_check
        %p1461 = pneg %p1460
      $region46: #{basic_block3d_v2.3} parent=5 // pred_check_branch
        %1463 = sbr.rel (%p1461) target = $region48
      $region47: #{basic_block3d_v2.3} parent=5 // pred_region
        %s1464 = ssub.s32 %s14, 2
        // Predicated region
        $region49: #{basic_block3d_v2.3} parent=47 // pred_check
          %p1465 = pneg %p172
        $region50: #{basic_block3d_v2.3} parent=47 // pred_check_branch
          %1467 = sbr.rel (%p1465) target = $region52
        $region51: #{basic_block3d_v2.3} parent=47 // pred_region
          %s1468 = sand.u32 %s157, 1
          %s1469 = scalar_lea.sflag [#allocation3], %s1468
          %s1470 = sand.u32 %s157, 1
          %s1471 = smul.addr %s1470, 512
          %s1472 = scalar_lea.vmem [#allocation2], %s1471
          %1474 = dma.done %s1469, 8192
        $region52: #{basic_block3d_v2.3} parent=47 // pred_fallthru
          _
      $region48: #{basic_block3d_v2.3} parent=5 // pred_fallthru
        _
    $region6: #{basic_block3d_v2.3} parent=1 // loop_footer
      %s18 = sadd.s32 1, %s14
    $region7: #{basic_block3d_v2.3} parent=1 // loop_footer_branch
      %13 = sbr.rel target = $region3
    $region8: #{basic_block3d_v2.3} parent=1 // loop_exit
      _
    %1475 = vsyncpa [#allocation3], 1
    %s1476 = scalar_lea.sflag [#allocation3], 1
    %1477 = vsyncpa %s1476, 1

</llo_original>
